<compile_context>
chip_gen: v7x
topology: tpu7x:2x2x1
jax: 0.10.0
libtpu: 0.0.40
codegen_flags: <defaults>
</compile_context>

<pallas_src>
import functools
import math

import jax
import jax.numpy as jnp
from jax import lax
from jax.experimental import pallas as pl
from jax.experimental.pallas import tpu as pltpu


def mha_kernel(x_ref, wq_ref, wkv_ref, wproj_ref, bproj_ref, o_ref,
               kv_scr, out_scr, *, num_heads, head_size, tq):
    """One grid step = one (batch element, query tile).

    x_ref:     (T_pad, C)      full (padded) sequence for this batch, bf16
    wq_ref:    (C, H*hs)       fused Q weight, bf16, 1/sqrt(hs) pre-folded
    wkv_ref:   (C, 2*H*hs)     fused K|V weight, bf16
    wproj_ref: (H*hs, C)       output projection, bf16
    bproj_ref: (1, C)          output bias, f32
    o_ref:     (tq, C)         output tile (f32)
    kv_scr:    (T_pad, 2*H*hs) bf16 VMEM scratch: K|V for the whole sequence,
                               computed at query tile 0, reused afterwards.
    out_scr:   (tq, H*hs)      bf16 VMEM scratch: per-head outputs (concat slab)
    """
    H, hs = num_heads, head_size
    q_idx = pl.program_id(1)

    # --- K/V projection for the whole (padded) sequence, once per batch. -----
    # Correct only because the q axis is "arbitrary" (sequential) so q_idx == 0
    # runs first for every batch element.
    @pl.when(q_idx == 0)
    def _():
        kv = jnp.dot(x_ref[...], wkv_ref[...],
                     preferred_element_type=jnp.float32)          # (T, 2*H*hs)
        kv_scr[...] = kv.astype(jnp.bfloat16)

    # --- Q projection for this query tile (scale already folded into wq). ----
    q_start = pl.multiple_of(q_idx * tq, tq)
    x_tile = x_ref[pl.ds(q_start, tq), :]                         # (tq, C) bf16
    q_slab = jnp.dot(x_tile, wq_ref[...],
                     preferred_element_type=jnp.float32).astype(jnp.bfloat16)

    # --- Causal mask bias for the DIAGONAL key block only (local coords). ----
    # Finite (-1e30) so exp underflows to 0 and padded rows can't NaN.
    row = lax.broadcasted_iota(jnp.int32, (tq, tq), 0)
    col = lax.broadcasted_iota(jnp.int32, (tq, tq), 1)
    diag_bias = jnp.where(col <= row, 0.0, -1e30).astype(jnp.float32)

    m_init = jnp.full((tq, 1), -1e30, jnp.float32)
    l_init = jnp.zeros((tq, 1), jnp.float32)

    # --- Per-head attention over the causally visible key prefix. -----------
    for h in range(H):
        q_h = q_slab[:, h * hs:(h + 1) * hs]                      # (tq, hs) bf16

        def attend(k_start, bias, carry, q_h=q_h, h=h):
            """Online-softmax update for one (tq, tq) key block."""
            m_i, l_i, acc = carry
            k_blk = kv_scr[pl.ds(k_start, tq), h * hs:(h + 1) * hs]
            v_blk = kv_scr[pl.ds(k_start, tq), (H + h) * hs:(H + h + 1) * hs]
            s = lax.dot_general(q_h, k_blk, (((1,), (1,)), ((), ())),
                                preferred_element_type=jnp.float32)  # (tq, tq)
            if bias is not None:
                s = s + bias
            m_new = jnp.maximum(m_i, jnp.max(s, axis=-1, keepdims=True))
            alpha = jnp.exp(m_i - m_new)
            e = jnp.exp(s - m_new)                                 # unnormalized
            l_new = alpha * l_i + jnp.sum(e, axis=-1, keepdims=True)
            # Deferred normalization: use raw e in P@V, divide by l at the end.
            acc_new = alpha * acc + jnp.dot(e.astype(jnp.bfloat16), v_blk,
                                            preferred_element_type=jnp.float32)
            return m_new, l_new, acc_new

        def body(kb, carry):
            return attend(pl.multiple_of(kb * tq, tq), None, carry)

        carry0 = (m_init, l_init, jnp.zeros((tq, hs), jnp.float32))
        # Fully-visible (unmasked) key blocks strictly below the diagonal.
        carry = lax.fori_loop(0, q_idx, body, carry0)
        # Diagonal key block with the causal mask.
        _, l_i, acc = attend(q_start, diag_bias, carry)

        inv = pl.reciprocal(l_i, approx=True)                      # (tq, 1)
        out_scr[:, h * hs:(h + 1) * hs] = (acc * inv).astype(jnp.bfloat16)
        # TODO(synk): attention dropout omitted (inference/eval -> identity).

    # --- Output projection from the VMEM head-slab + bias. ------------------
    proj = jnp.dot(out_scr[...], wproj_ref[...],
                   preferred_element_type=jnp.float32) + bproj_ref[...]
    # TODO(synk): output dropout omitted (inference/eval -> identity).
    o_ref[...] = proj.astype(o_ref.dtype)


def _tiles(T):
    """Query/key tile size and padded sequence length."""
    if T <= 128:
        return T, T          # single full-dim tile, no padding
    tq = 128
    t_pad = ((T + tq - 1) // tq) * tq
    return tq, t_pad


def multi_head_attention(x, wq, wk, wv, wproj, bproj):
    """x: (B, T, C); wq/wk/wv: (H, C, hs); wproj: (H*hs, C); bproj: (1, C)."""
    B, T, C = x.shape
    H, _, hs = wq.shape
    scale = 1.0 / math.sqrt(hs)
    out_dtype = x.dtype

    # Fused, lane-dense bf16 weights for the MXU.  The attention scale is
    # folded into W_q so it never touches the score tensor.
    wq_f = (jnp.transpose(wq, (1, 0, 2)).reshape(C, H * hs)
            * scale).astype(jnp.bfloat16)                          # (C, H*hs)
    wk_f = jnp.transpose(wk, (1, 0, 2)).reshape(C, H * hs)
    wv_f = jnp.transpose(wv, (1, 0, 2)).reshape(C, H * hs)
    wkv_f = jnp.concatenate([wk_f, wv_f], axis=-1).astype(jnp.bfloat16)  # (C, 2*H*hs)
    wproj_b = wproj.astype(jnp.bfloat16)                           # (H*hs, C)
    bproj_f = bproj.astype(jnp.float32)                            # (1, C)

    tq, t_pad = _tiles(T)
    nq = t_pad // tq

    # bf16 activations halve HBM read traffic and the (T, C) VMEM block.
    x_bf = x.astype(jnp.bfloat16)
    if t_pad != T:
        # Zero-padded keys are excluded by the causal mask for real query rows;
        # padded query rows are sliced off below.
        x_bf = jnp.pad(x_bf, ((0, 0), (0, t_pad - T), (0, 0)))

    kernel = functools.partial(mha_kernel, num_heads=H, head_size=hs, tq=tq)
    const = lambda shape: pl.BlockSpec(shape, lambda b, q: tuple(0 for _ in shape))

    out = pl.pallas_call(
        kernel,
        out_shape=jax.ShapeDtypeStruct((B, t_pad, C), out_dtype),
        grid_spec=pltpu.PrefetchScalarGridSpec(
            num_scalar_prefetch=0,
            grid=(B, nq),
            in_specs=[
                # Full (padded) sequence per batch element; block index is
                # constant in q so it is only re-fetched when b changes.
                pl.BlockSpec((pl.Squeezed(), t_pad, C), lambda b, q: (b, 0, 0)),
                const((C, H * hs)),        # fused Q weight
                const((C, 2 * H * hs)),    # fused K|V weight
                const((H * hs, C)),        # output projection
                const((1, C)),             # output bias
            ],
            out_specs=pl.BlockSpec((pl.Squeezed(), tq, C),
                                   lambda b, q: (b, q, 0)),
            scratch_shapes=[
                pltpu.VMEM((t_pad, 2 * H * hs), jnp.bfloat16),  # kv_scr
                pltpu.VMEM((tq, H * hs), jnp.bfloat16),         # out_scr
            ],
        ),
        compiler_params=pltpu.CompilerParams(
            # Batch axis is independent ("parallel" -> megacore sharding); the
            # query-tile axis carries the K/V scratch -> MUST stay "arbitrary".
            dimension_semantics=("parallel", "arbitrary")),
    )(x_bf, wq_f, wkv_f, wproj_b, bproj_f)

    return out[:, :T, :] if t_pad != T else out


def reference(x, wq, wk, wv, wproj, bproj):
    """Pure-JAX f32 reference mirroring the PyTorch module (eval mode)."""
    H, _, hs = wq.shape
    scale = 1.0 / math.sqrt(hs)
    q = jnp.einsum('btc,hcs->bhts', x, wq)
    k = jnp.einsum('btc,hcs->bhts', x, wk)
    v = jnp.einsum('btc,hcs->bhts', x, wv)
    wei = jnp.einsum('bhts,bhus->bhtu', q, k) * scale
    T = x.shape[1]
    mask = jnp.tril(jnp.ones((T, T), dtype=bool))
    wei = jnp.where(mask[None, None], wei, -jnp.inf)
    wei = jax.nn.softmax(wei, axis=-1)
    out = jnp.einsum('bhtu,bhus->bhts', wei, v)
    B = x.shape[0]
    out_cat = jnp.transpose(out, (0, 2, 1, 3)).reshape(B, T, H * hs)
    return out_cat @ wproj + bproj[0]


def _init_params(key, num_heads, head_size, n_embd):
    kq, kk, kv, kp, kb = jax.random.split(key, 5)
    init = lambda k, shape: (jax.random.uniform(k, shape, jnp.float32, -1.0, 1.0)
                             / math.sqrt(n_embd))
    wq = init(kq, (num_heads, n_embd, head_size))
    wk = init(kk, (num_heads, n_embd, head_size))
    wv = init(kv, (num_heads, n_embd, head_size))
    wproj = init(kp, (num_heads * head_size, n_embd))
    bproj = init(kb, (1, n_embd))
    return wq, wk, wv, wproj, bproj


if __name__ == "__main__":
    key = jax.random.PRNGKey(0)

    # Case 1: tiny smoke test (single query tile, diagonal-block path only).
    # Case 2: the module's own config (block_size=256, n_embd=384, 6 heads of
    #         64) which exercises query tiling (tq=128 -> 2 tiles), the causal
    #         key-block loop, and K/V scratch reuse across query tiles.
    for (B, T, H, hs) in [(2, 8, 4, 8), (2, 256, 6, 64)]:
        C = H * hs
        key, kx, kp = jax.random.split(key, 3)
        x = jax.random.normal(kx, (B, T, C), dtype=jnp.float32)
        wq, wk, wv, wproj, bproj = _init_params(kp, H, hs, C)

        out = multi_head_attention(x, wq, wk, wv, wproj, bproj)
        out = jax.block_until_ready(out)

        ref = reference(x, wq, wk, wv, wproj, bproj)
        assert out.shape == (B, T, C)
        # bf16 activations/weights + online softmax with approximate reciprocal
        # -> ~1e-2 error vs the f32 reference.
        err = jnp.max(jnp.abs(out - ref))
        assert jnp.allclose(out, ref, atol=5e-2, rtol=5e-2), \
            f"shape B={B} T={T} H={H} hs={hs}: max abs err = {err}"

    print("KERNEL_OK")
</pallas_src>

<mosaic_0001>
module attributes {stable_mosaic.version = 11 : i64} {
  func.func @mha_kernel(%arg0: i32, %arg1: i32, %arg2: memref<1x8x32xbf16, #tpu.memory_space<vmem>>, %arg3: memref<32x32xbf16, #tpu.memory_space<vmem>>, %arg4: memref<32x64xbf16, #tpu.memory_space<vmem>>, %arg5: memref<32x32xbf16, #tpu.memory_space<vmem>>, %arg6: memref<1x32xf32, #tpu.memory_space<vmem>>, %arg7: memref<1x8x32xf32, #tpu.memory_space<vmem>>, %arg8: memref<8x64xbf16, #tpu.memory_space<vmem>>, %arg9: memref<8x32xbf16, #tpu.memory_space<vmem>>) attributes {dimension_semantics = [#tpu.dimension_semantics<parallel>, #tpu.dimension_semantics<arbitrary>], iteration_bounds = array<i64: 2, 1>, scalar_prefetch = 0 : i64, scratch_operands = 2 : i64, tpu.core_type = #tpu.core_type<tc>, window_params = [{transform_indices = @transform_0, window_bounds = array<i64: 1, 8, 32>}, {pipeline_mode = #tpu.pipeline_mode<synchronous>, transform_indices = @transform_1, window_bounds = array<i64: 32, 32>}, {pipeline_mode = #tpu.pipeline_mode<synchronous>, transform_indices = @transform_2, window_bounds = array<i64: 32, 64>}, {pipeline_mode = #tpu.pipeline_mode<synchronous>, transform_indices = @transform_3, window_bounds = array<i64: 32, 32>}, {pipeline_mode = #tpu.pipeline_mode<synchronous>, transform_indices = @transform_4, window_bounds = array<i64: 1, 32>}, {transform_indices = @transform_5, window_bounds = array<i64: 1, 8, 32>}]} {
    %c0_i32 = arith.constant 0 : i32
    %0 = arith.cmpi eq, %arg1, %c0_i32 : i32
    %1 = arith.extui %0 : i1 to i32
    %c0_i32_0 = arith.constant 0 : i32
    %2 = arith.cmpi ne, %1, %c0_i32_0 : i32
    scf.if %2 {
      %c0_54 = arith.constant 0 : index
      %c0_55 = arith.constant 0 : index
      %c0_56 = arith.constant 0 : index
      %160 = vector.load %arg2[%c0_54, %c0_55, %c0_56] : memref<1x8x32xbf16, #tpu.memory_space<vmem>>, vector<1x8x32xbf16>
      %161 = vector.shape_cast %160 : vector<1x8x32xbf16> to vector<8x32xbf16>
      %c0_57 = arith.constant 0 : index
      %c0_58 = arith.constant 0 : index
      %162 = vector.load %arg4[%c0_57, %c0_58] : memref<32x64xbf16, #tpu.memory_space<vmem>>, vector<32x64xbf16>
      %cst_59 = arith.constant dense<0.000000e+00> : vector<8x64xf32>
      %163 = tpu.matmul %161, %162, %cst_59 {dimension_numbers = #tpu.dot_dimension_numbers<[1], [0], [0], [1], [0, 0, 1, 1], [], []>} : vector<8x32xbf16>, vector<32x64xbf16>, vector<8x64xf32> -> vector<8x64xf32>
      %164 = arith.truncf %163 : vector<8x64xf32> to vector<8x64xbf16>
      %c0_60 = arith.constant 0 : index
      %c0_61 = arith.constant 0 : index
      %165 = vector.load %arg8[%c0_60, %c0_61] : memref<8x64xbf16, #tpu.memory_space<vmem>>, vector<8x64xbf16>
      tpu.vector_store %arg8[%c0_60, %c0_61], %164 {strides = array<i32>} : memref<8x64xbf16, #tpu.memory_space<vmem>>, vector<8x64xbf16>,
    } else {
    }
    %c8_i32 = arith.constant 8 : i32
    %3 = arith.muli %arg1, %c8_i32 : i32
    %4 = tpu.assume_multiple %3, 8 : i32
    %c0 = arith.constant 0 : index
    %5 = arith.index_cast %4 : i32 to index
    %c0_1 = arith.constant 0 : index
    %6 = vector.load %arg2[%c0, %5, %c0_1] : memref<1x8x32xbf16, #tpu.memory_space<vmem>>, vector<1x8x32xbf16>
    %7 = vector.shape_cast %6 : vector<1x8x32xbf16> to vector<8x32xbf16>
    %c0_2 = arith.constant 0 : index
    %c0_3 = arith.constant 0 : index
    %8 = vector.load %arg3[%c0_2, %c0_3] : memref<32x32xbf16, #tpu.memory_space<vmem>>, vector<32x32xbf16>
    %cst = arith.constant dense<0.000000e+00> : vector<8x32xf32>
    %9 = tpu.matmul %7, %8, %cst {dimension_numbers = #tpu.dot_dimension_numbers<[1], [0], [0], [1], [0, 0, 1, 1], [], []>} : vector<8x32xbf16>, vector<32x32xbf16>, vector<8x32xf32> -> vector<8x32xf32>
    %10 = arith.truncf %9 : vector<8x32xf32> to vector<8x32xbf16>
    %11 = tpu.iota {dimensions = array<i32: 0>} : vector<8x8xi32>
    %12 = tpu.iota {dimensions = array<i32: 1>} : vector<8x8xi32>
    %13 = arith.cmpi sle, %12, %11 : vector<8x8xi32>
    %cst_4 = arith.constant 0.000000e+00 : f32
    %cst_5 = arith.constant -1.000000e+30 : f32
    %14 = vector.broadcast %cst_4 : f32 to vector<8x8xf32>
    %15 = vector.broadcast %cst_5 : f32 to vector<8x8xf32>
    %16 = arith.select %13, %14, %15 : vector<8x8xi1>, vector<8x8xf32>
    %cst_6 = arith.constant -1.000000e+30 : f32
    %17 = vector.broadcast %cst_6 : f32 to vector<8x1xf32>
    %cst_7 = arith.constant 0.000000e+00 : f32
    %18 = vector.broadcast %cst_7 : f32 to vector<8x1xf32>
    %19 = vector.extract_strided_slice %10 {offsets = [0, 0], sizes = [8, 8], strides = [1, 1]} : vector<8x32xbf16> to vector<8x8xbf16>
    %cst_8 = arith.constant 0.000000e+00 : f32
    %20 = vector.broadcast %cst_8 : f32 to vector<8x8xf32>
    %c0_i32_9 = arith.constant 0 : i32
    %21 = arith.subi %arg1, %c0_i32_9 : i32
    %22 = arith.addi %c0_i32_9, %21 : i32
    %c1_i32 = arith.constant 1 : i32
    %23:3 = scf.for %arg10 = %c0_i32_9 to %22 step %c1_i32 iter_args(%arg11 = %17, %arg12 = %18, %arg13 = %20) -> (vector<8x1xf32>, vector<8x1xf32>, vector<8x8xf32>)  : i32 {
      %c8_i32_54 = arith.constant 8 : i32
      %160 = arith.muli %arg10, %c8_i32_54 : i32
      %161 = tpu.assume_multiple %160, 8 : i32
      %162 = arith.index_cast %161 : i32 to index
      %c0_55 = arith.constant 0 : index
      %163 = vector.load %arg8[%162, %c0_55] : memref<8x64xbf16, #tpu.memory_space<vmem>>, vector<8x8xbf16>
      %164 = arith.index_cast %161 : i32 to index
      %c32_56 = arith.constant 32 : index
      %165 = vector.load %arg8[%164, %c32_56] : memref<8x64xbf16, #tpu.memory_space<vmem>>, vector<8x8xbf16>
      %cst_57 = arith.constant dense<0.000000e+00> : vector<8x8xf32>
      %166 = tpu.matmul %19, %163, %cst_57 {dimension_numbers = #tpu.dot_dimension_numbers<[1], [1], [0], [0], [0, 0, 1, 0], [], []>} : vector<8x8xbf16>, vector<8x8xbf16>, vector<8x8xf32> -> vector<8x8xf32>
      %cst_58 = arith.constant dense<0xFF800000> : vector<8xf32>
      %167 = vector.multi_reduction <maximumf>, %166, %cst_58 [1] : vector<8x8xf32> to vector<8xf32>
      %168 = vector.shape_cast %167 : vector<8xf32> to vector<8x1xf32>
      %169 = arith.maximumf %arg11, %168 : vector<8x1xf32>
      %170 = arith.subf %arg11, %169 : vector<8x1xf32>
      %171 = math.exp %170 : vector<8x1xf32>
      %172 = vector.broadcast %169 : vector<8x1xf32> to vector<8x8xf32>
      %173 = arith.subf %166, %172 : vector<8x8xf32>
      %174 = math.exp %173 : vector<8x8xf32>
      %175 = arith.mulf %171, %arg12 : vector<8x1xf32>
      %cst_59 = arith.constant dense<0.000000e+00> : vector<8xf32>
      %176 = vector.multi_reduction <add>, %174, %cst_59 [1] : vector<8x8xf32> to vector<8xf32>
      %177 = vector.shape_cast %176 : vector<8xf32> to vector<8x1xf32>
      %178 = arith.addf %175, %177 : vector<8x1xf32>
      %179 = vector.broadcast %171 : vector<8x1xf32> to vector<8x8xf32>
      %180 = arith.mulf %179, %arg13 : vector<8x8xf32>
      %181 = arith.truncf %174 : vector<8x8xf32> to vector<8x8xbf16>
      %cst_60 = arith.constant dense<0.000000e+00> : vector<8x8xf32>
      %182 = tpu.matmul %181, %165, %cst_60 {dimension_numbers = #tpu.dot_dimension_numbers<[1], [0], [0], [1], [0, 0, 1, 1], [], []>} : vector<8x8xbf16>, vector<8x8xbf16>, vector<8x8xf32> -> vector<8x8xf32>
      %183 = arith.addf %180, %182 : vector<8x8xf32>
      scf.yield %169, %178, %183 : vector<8x1xf32>, vector<8x1xf32>, vector<8x8xf32>
    }
    %24 = arith.index_cast %4 : i32 to index
    %c0_10 = arith.constant 0 : index
    %25 = vector.load %arg8[%24, %c0_10] : memref<8x64xbf16, #tpu.memory_space<vmem>>, vector<8x8xbf16>
    %26 = arith.index_cast %4 : i32 to index
    %c32 = arith.constant 32 : index
    %27 = vector.load %arg8[%26, %c32] : memref<8x64xbf16, #tpu.memory_space<vmem>>, vector<8x8xbf16>
    %cst_11 = arith.constant dense<0.000000e+00> : vector<8x8xf32>
    %28 = tpu.matmul %19, %25, %cst_11 {dimension_numbers = #tpu.dot_dimension_numbers<[1], [1], [0], [0], [0, 0, 1, 0], [], []>} : vector<8x8xbf16>, vector<8x8xbf16>, vector<8x8xf32> -> vector<8x8xf32>
    %29 = arith.addf %28, %16 : vector<8x8xf32>
    %cst_12 = arith.constant dense<0xFF800000> : vector<8xf32>
    %30 = vector.multi_reduction <maximumf>, %29, %cst_12 [1] : vector<8x8xf32> to vector<8xf32>
    %31 = vector.shape_cast %30 : vector<8xf32> to vector<8x1xf32>
    %32 = arith.maximumf %23#0, %31 : vector<8x1xf32>
    %33 = arith.subf %23#0, %32 : vector<8x1xf32>
    %34 = math.exp %33 : vector<8x1xf32>
    %35 = vector.broadcast %32 : vector<8x1xf32> to vector<8x8xf32>
    %36 = arith.subf %29, %35 : vector<8x8xf32>
    %37 = math.exp %36 : vector<8x8xf32>
    %38 = arith.mulf %34, %23#1 : vector<8x1xf32>
    %cst_13 = arith.constant dense<0.000000e+00> : vector<8xf32>
    %39 = vector.multi_reduction <add>, %37, %cst_13 [1] : vector<8x8xf32> to vector<8xf32>
    %40 = vector.shape_cast %39 : vector<8xf32> to vector<8x1xf32>
    %41 = arith.addf %38, %40 : vector<8x1xf32>
    %42 = vector.broadcast %34 : vector<8x1xf32> to vector<8x8xf32>
    %43 = arith.mulf %42, %23#2 : vector<8x8xf32>
    %44 = arith.truncf %37 : vector<8x8xf32> to vector<8x8xbf16>
    %cst_14 = arith.constant dense<0.000000e+00> : vector<8x8xf32>
    %45 = tpu.matmul %44, %27, %cst_14 {dimension_numbers = #tpu.dot_dimension_numbers<[1], [0], [0], [1], [0, 0, 1, 1], [], []>} : vector<8x8xbf16>, vector<8x8xbf16>, vector<8x8xf32> -> vector<8x8xf32>
    %46 = arith.addf %43, %45 : vector<8x8xf32>
    %47 = tpu.reciprocal %41 {approx = true} : vector<8x1xf32> -> vector<8x1xf32>
    %48 = vector.broadcast %47 : vector<8x1xf32> to vector<8x8xf32>
    %49 = arith.mulf %46, %48 : vector<8x8xf32>
    %50 = arith.truncf %49 : vector<8x8xf32> to vector<8x8xbf16>
    %c0_15 = arith.constant 0 : index
    %c0_16 = arith.constant 0 : index
    %51 = vector.load %arg9[%c0_15, %c0_16] : memref<8x32xbf16, #tpu.memory_space<vmem>>, vector<8x8xbf16>
    tpu.vector_store %arg9[%c0_15, %c0_16], %50 {strides = array<i32>} : memref<8x32xbf16, #tpu.memory_space<vmem>>, vector<8x8xbf16>,
    %52 = vector.extract_strided_slice %10 {offsets = [0, 8], sizes = [8, 8], strides = [1, 1]} : vector<8x32xbf16> to vector<8x8xbf16>
    %cst_17 = arith.constant 0.000000e+00 : f32
    %53 = vector.broadcast %cst_17 : f32 to vector<8x8xf32>
    %c0_i32_18 = arith.constant 0 : i32
    %54 = arith.subi %arg1, %c0_i32_18 : i32
    %55 = arith.addi %c0_i32_18, %54 : i32
    %c1_i32_19 = arith.constant 1 : i32
    %56:3 = scf.for %arg10 = %c0_i32_18 to %55 step %c1_i32_19 iter_args(%arg11 = %17, %arg12 = %18, %arg13 = %53) -> (vector<8x1xf32>, vector<8x1xf32>, vector<8x8xf32>)  : i32 {
      %c8_i32_54 = arith.constant 8 : i32
      %160 = arith.muli %arg10, %c8_i32_54 : i32
      %161 = tpu.assume_multiple %160, 8 : i32
      %162 = arith.index_cast %161 : i32 to index
      %c8_55 = arith.constant 8 : index
      %163 = vector.load %arg8[%162, %c8_55] : memref<8x64xbf16, #tpu.memory_space<vmem>>, vector<8x8xbf16>
      %164 = arith.index_cast %161 : i32 to index
      %c40_56 = arith.constant 40 : index
      %165 = vector.load %arg8[%164, %c40_56] : memref<8x64xbf16, #tpu.memory_space<vmem>>, vector<8x8xbf16>
      %cst_57 = arith.constant dense<0.000000e+00> : vector<8x8xf32>
      %166 = tpu.matmul %52, %163, %cst_57 {dimension_numbers = #tpu.dot_dimension_numbers<[1], [1], [0], [0], [0, 0, 1, 0], [], []>} : vector<8x8xbf16>, vector<8x8xbf16>, vector<8x8xf32> -> vector<8x8xf32>
      %cst_58 = arith.constant dense<0xFF800000> : vector<8xf32>
      %167 = vector.multi_reduction <maximumf>, %166, %cst_58 [1] : vector<8x8xf32> to vector<8xf32>
      %168 = vector.shape_cast %167 : vector<8xf32> to vector<8x1xf32>
      %169 = arith.maximumf %arg11, %168 : vector<8x1xf32>
      %170 = arith.subf %arg11, %169 : vector<8x1xf32>
      %171 = math.exp %170 : vector<8x1xf32>
      %172 = vector.broadcast %169 : vector<8x1xf32> to vector<8x8xf32>
      %173 = arith.subf %166, %172 : vector<8x8xf32>
      %174 = math.exp %173 : vector<8x8xf32>
      %175 = arith.mulf %171, %arg12 : vector<8x1xf32>
      %cst_59 = arith.constant dense<0.000000e+00> : vector<8xf32>
      %176 = vector.multi_reduction <add>, %174, %cst_59 [1] : vector<8x8xf32> to vector<8xf32>
      %177 = vector.shape_cast %176 : vector<8xf32> to vector<8x1xf32>
      %178 = arith.addf %175, %177 : vector<8x1xf32>
      %179 = vector.broadcast %171 : vector<8x1xf32> to vector<8x8xf32>
      %180 = arith.mulf %179, %arg13 : vector<8x8xf32>
      %181 = arith.truncf %174 : vector<8x8xf32> to vector<8x8xbf16>
      %cst_60 = arith.constant dense<0.000000e+00> : vector<8x8xf32>
      %182 = tpu.matmul %181, %165, %cst_60 {dimension_numbers = #tpu.dot_dimension_numbers<[1], [0], [0], [1], [0, 0, 1, 1], [], []>} : vector<8x8xbf16>, vector<8x8xbf16>, vector<8x8xf32> -> vector<8x8xf32>
      %183 = arith.addf %180, %182 : vector<8x8xf32>
      scf.yield %169, %178, %183 : vector<8x1xf32>, vector<8x1xf32>, vector<8x8xf32>
    }
    %57 = arith.index_cast %4 : i32 to index
    %c8 = arith.constant 8 : index
    %58 = vector.load %arg8[%57, %c8] : memref<8x64xbf16, #tpu.memory_space<vmem>>, vector<8x8xbf16>
    %59 = arith.index_cast %4 : i32 to index
    %c40 = arith.constant 40 : index
    %60 = vector.load %arg8[%59, %c40] : memref<8x64xbf16, #tpu.memory_space<vmem>>, vector<8x8xbf16>
    %cst_20 = arith.constant dense<0.000000e+00> : vector<8x8xf32>
    %61 = tpu.matmul %52, %58, %cst_20 {dimension_numbers = #tpu.dot_dimension_numbers<[1], [1], [0], [0], [0, 0, 1, 0], [], []>} : vector<8x8xbf16>, vector<8x8xbf16>, vector<8x8xf32> -> vector<8x8xf32>
    %62 = arith.addf %61, %16 : vector<8x8xf32>
    %cst_21 = arith.constant dense<0xFF800000> : vector<8xf32>
    %63 = vector.multi_reduction <maximumf>, %62, %cst_21 [1] : vector<8x8xf32> to vector<8xf32>
    %64 = vector.shape_cast %63 : vector<8xf32> to vector<8x1xf32>
    %65 = arith.maximumf %56#0, %64 : vector<8x1xf32>
    %66 = arith.subf %56#0, %65 : vector<8x1xf32>
    %67 = math.exp %66 : vector<8x1xf32>
    %68 = vector.broadcast %65 : vector<8x1xf32> to vector<8x8xf32>
    %69 = arith.subf %62, %68 : vector<8x8xf32>
    %70 = math.exp %69 : vector<8x8xf32>
    %71 = arith.mulf %67, %56#1 : vector<8x1xf32>
    %cst_22 = arith.constant dense<0.000000e+00> : vector<8xf32>
    %72 = vector.multi_reduction <add>, %70, %cst_22 [1] : vector<8x8xf32> to vector<8xf32>
    %73 = vector.shape_cast %72 : vector<8xf32> to vector<8x1xf32>
    %74 = arith.addf %71, %73 : vector<8x1xf32>
    %75 = vector.broadcast %67 : vector<8x1xf32> to vector<8x8xf32>
    %76 = arith.mulf %75, %56#2 : vector<8x8xf32>
    %77 = arith.truncf %70 : vector<8x8xf32> to vector<8x8xbf16>
    %cst_23 = arith.constant dense<0.000000e+00> : vector<8x8xf32>
    %78 = tpu.matmul %77, %60, %cst_23 {dimension_numbers = #tpu.dot_dimension_numbers<[1], [0], [0], [1], [0, 0, 1, 1], [], []>} : vector<8x8xbf16>, vector<8x8xbf16>, vector<8x8xf32> -> vector<8x8xf32>
    %79 = arith.addf %76, %78 : vector<8x8xf32>
    %80 = tpu.reciprocal %74 {approx = true} : vector<8x1xf32> -> vector<8x1xf32>
    %81 = vector.broadcast %80 : vector<8x1xf32> to vector<8x8xf32>
    %82 = arith.mulf %79, %81 : vector<8x8xf32>
    %83 = arith.truncf %82 : vector<8x8xf32> to vector<8x8xbf16>
    %c0_24 = arith.constant 0 : index
    %c8_25 = arith.constant 8 : index
    %84 = vector.load %arg9[%c0_24, %c8_25] : memref<8x32xbf16, #tpu.memory_space<vmem>>, vector<8x8xbf16>
    tpu.vector_store %arg9[%c0_24, %c8_25], %83 {strides = array<i32>} : memref<8x32xbf16, #tpu.memory_space<vmem>>, vector<8x8xbf16>,
    %85 = vector.extract_strided_slice %10 {offsets = [0, 16], sizes = [8, 8], strides = [1, 1]} : vector<8x32xbf16> to vector<8x8xbf16>
    %cst_26 = arith.constant 0.000000e+00 : f32
    %86 = vector.broadcast %cst_26 : f32 to vector<8x8xf32>
    %c0_i32_27 = arith.constant 0 : i32
    %87 = arith.subi %arg1, %c0_i32_27 : i32
    %88 = arith.addi %c0_i32_27, %87 : i32
    %c1_i32_28 = arith.constant 1 : i32
    %89:3 = scf.for %arg10 = %c0_i32_27 to %88 step %c1_i32_28 iter_args(%arg11 = %17, %arg12 = %18, %arg13 = %86) -> (vector<8x1xf32>, vector<8x1xf32>, vector<8x8xf32>)  : i32 {
      %c8_i32_54 = arith.constant 8 : i32
      %160 = arith.muli %arg10, %c8_i32_54 : i32
      %161 = tpu.assume_multiple %160, 8 : i32
      %162 = arith.index_cast %161 : i32 to index
      %c16_55 = arith.constant 16 : index
      %163 = vector.load %arg8[%162, %c16_55] : memref<8x64xbf16, #tpu.memory_space<vmem>>, vector<8x8xbf16>
      %164 = arith.index_cast %161 : i32 to index
      %c48_56 = arith.constant 48 : index
      %165 = vector.load %arg8[%164, %c48_56] : memref<8x64xbf16, #tpu.memory_space<vmem>>, vector<8x8xbf16>
      %cst_57 = arith.constant dense<0.000000e+00> : vector<8x8xf32>
      %166 = tpu.matmul %85, %163, %cst_57 {dimension_numbers = #tpu.dot_dimension_numbers<[1], [1], [0], [0], [0, 0, 1, 0], [], []>} : vector<8x8xbf16>, vector<8x8xbf16>, vector<8x8xf32> -> vector<8x8xf32>
      %cst_58 = arith.constant dense<0xFF800000> : vector<8xf32>
      %167 = vector.multi_reduction <maximumf>, %166, %cst_58 [1] : vector<8x8xf32> to vector<8xf32>
      %168 = vector.shape_cast %167 : vector<8xf32> to vector<8x1xf32>
      %169 = arith.maximumf %arg11, %168 : vector<8x1xf32>
      %170 = arith.subf %arg11, %169 : vector<8x1xf32>
      %171 = math.exp %170 : vector<8x1xf32>
      %172 = vector.broadcast %169 : vector<8x1xf32> to vector<8x8xf32>
      %173 = arith.subf %166, %172 : vector<8x8xf32>
      %174 = math.exp %173 : vector<8x8xf32>
      %175 = arith.mulf %171, %arg12 : vector<8x1xf32>
      %cst_59 = arith.constant dense<0.000000e+00> : vector<8xf32>
      %176 = vector.multi_reduction <add>, %174, %cst_59 [1] : vector<8x8xf32> to vector<8xf32>
      %177 = vector.shape_cast %176 : vector<8xf32> to vector<8x1xf32>
      %178 = arith.addf %175, %177 : vector<8x1xf32>
      %179 = vector.broadcast %171 : vector<8x1xf32> to vector<8x8xf32>
      %180 = arith.mulf %179, %arg13 : vector<8x8xf32>
      %181 = arith.truncf %174 : vector<8x8xf32> to vector<8x8xbf16>
      %cst_60 = arith.constant dense<0.000000e+00> : vector<8x8xf32>
      %182 = tpu.matmul %181, %165, %cst_60 {dimension_numbers = #tpu.dot_dimension_numbers<[1], [0], [0], [1], [0, 0, 1, 1], [], []>} : vector<8x8xbf16>, vector<8x8xbf16>, vector<8x8xf32> -> vector<8x8xf32>
      %183 = arith.addf %180, %182 : vector<8x8xf32>
      scf.yield %169, %178, %183 : vector<8x1xf32>, vector<8x1xf32>, vector<8x8xf32>
    }
    %90 = arith.index_cast %4 : i32 to index
    %c16 = arith.constant 16 : index
    %91 = vector.load %arg8[%90, %c16] : memref<8x64xbf16, #tpu.memory_space<vmem>>, vector<8x8xbf16>
    %92 = arith.index_cast %4 : i32 to index
    %c48 = arith.constant 48 : index
    %93 = vector.load %arg8[%92, %c48] : memref<8x64xbf16, #tpu.memory_space<vmem>>, vector<8x8xbf16>
    %cst_29 = arith.constant dense<0.000000e+00> : vector<8x8xf32>
    %94 = tpu.matmul %85, %91, %cst_29 {dimension_numbers = #tpu.dot_dimension_numbers<[1], [1], [0], [0], [0, 0, 1, 0], [], []>} : vector<8x8xbf16>, vector<8x8xbf16>, vector<8x8xf32> -> vector<8x8xf32>
    %95 = arith.addf %94, %16 : vector<8x8xf32>
    %cst_30 = arith.constant dense<0xFF800000> : vector<8xf32>
    %96 = vector.multi_reduction <maximumf>, %95, %cst_30 [1] : vector<8x8xf32> to vector<8xf32>
    %97 = vector.shape_cast %96 : vector<8xf32> to vector<8x1xf32>
    %98 = arith.maximumf %89#0, %97 : vector<8x1xf32>
    %99 = arith.subf %89#0, %98 : vector<8x1xf32>
    %100 = math.exp %99 : vector<8x1xf32>
    %101 = vector.broadcast %98 : vector<8x1xf32> to vector<8x8xf32>
    %102 = arith.subf %95, %101 : vector<8x8xf32>
    %103 = math.exp %102 : vector<8x8xf32>
    %104 = arith.mulf %100, %89#1 : vector<8x1xf32>
    %cst_31 = arith.constant dense<0.000000e+00> : vector<8xf32>
    %105 = vector.multi_reduction <add>, %103, %cst_31 [1] : vector<8x8xf32> to vector<8xf32>
    %106 = vector.shape_cast %105 : vector<8xf32> to vector<8x1xf32>
    %107 = arith.addf %104, %106 : vector<8x1xf32>
    %108 = vector.broadcast %100 : vector<8x1xf32> to vector<8x8xf32>
    %109 = arith.mulf %108, %89#2 : vector<8x8xf32>
    %110 = arith.truncf %103 : vector<8x8xf32> to vector<8x8xbf16>
    %cst_32 = arith.constant dense<0.000000e+00> : vector<8x8xf32>
    %111 = tpu.matmul %110, %93, %cst_32 {dimension_numbers = #tpu.dot_dimension_numbers<[1], [0], [0], [1], [0, 0, 1, 1], [], []>} : vector<8x8xbf16>, vector<8x8xbf16>, vector<8x8xf32> -> vector<8x8xf32>
    %112 = arith.addf %109, %111 : vector<8x8xf32>
    %113 = tpu.reciprocal %107 {approx = true} : vector<8x1xf32> -> vector<8x1xf32>
    %114 = vector.broadcast %113 : vector<8x1xf32> to vector<8x8xf32>
    %115 = arith.mulf %112, %114 : vector<8x8xf32>
    %116 = arith.truncf %115 : vector<8x8xf32> to vector<8x8xbf16>
    %c0_33 = arith.constant 0 : index
    %c16_34 = arith.constant 16 : index
    %117 = vector.load %arg9[%c0_33, %c16_34] : memref<8x32xbf16, #tpu.memory_space<vmem>>, vector<8x8xbf16>
    tpu.vector_store %arg9[%c0_33, %c16_34], %116 {strides = array<i32>} : memref<8x32xbf16, #tpu.memory_space<vmem>>, vector<8x8xbf16>,
    %118 = vector.extract_strided_slice %10 {offsets = [0, 24], sizes = [8, 8], strides = [1, 1]} : vector<8x32xbf16> to vector<8x8xbf16>
    %cst_35 = arith.constant 0.000000e+00 : f32
    %119 = vector.broadcast %cst_35 : f32 to vector<8x8xf32>
    %c0_i32_36 = arith.constant 0 : i32
    %120 = arith.subi %arg1, %c0_i32_36 : i32
    %121 = arith.addi %c0_i32_36, %120 : i32
    %c1_i32_37 = arith.constant 1 : i32
    %122:3 = scf.for %arg10 = %c0_i32_36 to %121 step %c1_i32_37 iter_args(%arg11 = %17, %arg12 = %18, %arg13 = %119) -> (vector<8x1xf32>, vector<8x1xf32>, vector<8x8xf32>)  : i32 {
      %c8_i32_54 = arith.constant 8 : i32
      %160 = arith.muli %arg10, %c8_i32_54 : i32
      %161 = tpu.assume_multiple %160, 8 : i32
      %162 = arith.index_cast %161 : i32 to index
      %c24_55 = arith.constant 24 : index
      %163 = vector.load %arg8[%162, %c24_55] : memref<8x64xbf16, #tpu.memory_space<vmem>>, vector<8x8xbf16>
      %164 = arith.index_cast %161 : i32 to index
      %c56_56 = arith.constant 56 : index
      %165 = vector.load %arg8[%164, %c56_56] : memref<8x64xbf16, #tpu.memory_space<vmem>>, vector<8x8xbf16>
      %cst_57 = arith.constant dense<0.000000e+00> : vector<8x8xf32>
      %166 = tpu.matmul %118, %163, %cst_57 {dimension_numbers = #tpu.dot_dimension_numbers<[1], [1], [0], [0], [0, 0, 1, 0], [], []>} : vector<8x8xbf16>, vector<8x8xbf16>, vector<8x8xf32> -> vector<8x8xf32>
      %cst_58 = arith.constant dense<0xFF800000> : vector<8xf32>
      %167 = vector.multi_reduction <maximumf>, %166, %cst_58 [1] : vector<8x8xf32> to vector<8xf32>
      %168 = vector.shape_cast %167 : vector<8xf32> to vector<8x1xf32>
      %169 = arith.maximumf %arg11, %168 : vector<8x1xf32>
      %170 = arith.subf %arg11, %169 : vector<8x1xf32>
      %171 = math.exp %170 : vector<8x1xf32>
      %172 = vector.broadcast %169 : vector<8x1xf32> to vector<8x8xf32>
      %173 = arith.subf %166, %172 : vector<8x8xf32>
      %174 = math.exp %173 : vector<8x8xf32>
      %175 = arith.mulf %171, %arg12 : vector<8x1xf32>
      %cst_59 = arith.constant dense<0.000000e+00> : vector<8xf32>
      %176 = vector.multi_reduction <add>, %174, %cst_59 [1] : vector<8x8xf32> to vector<8xf32>
      %177 = vector.shape_cast %176 : vector<8xf32> to vector<8x1xf32>
      %178 = arith.addf %175, %177 : vector<8x1xf32>
      %179 = vector.broadcast %171 : vector<8x1xf32> to vector<8x8xf32>
      %180 = arith.mulf %179, %arg13 : vector<8x8xf32>
      %181 = arith.truncf %174 : vector<8x8xf32> to vector<8x8xbf16>
      %cst_60 = arith.constant dense<0.000000e+00> : vector<8x8xf32>
      %182 = tpu.matmul %181, %165, %cst_60 {dimension_numbers = #tpu.dot_dimension_numbers<[1], [0], [0], [1], [0, 0, 1, 1], [], []>} : vector<8x8xbf16>, vector<8x8xbf16>, vector<8x8xf32> -> vector<8x8xf32>
      %183 = arith.addf %180, %182 : vector<8x8xf32>
      scf.yield %169, %178, %183 : vector<8x1xf32>, vector<8x1xf32>, vector<8x8xf32>
    }
    %123 = arith.index_cast %4 : i32 to index
    %c24 = arith.constant 24 : index
    %124 = vector.load %arg8[%123, %c24] : memref<8x64xbf16, #tpu.memory_space<vmem>>, vector<8x8xbf16>
    %125 = arith.index_cast %4 : i32 to index
    %c56 = arith.constant 56 : index
    %126 = vector.load %arg8[%125, %c56] : memref<8x64xbf16, #tpu.memory_space<vmem>>, vector<8x8xbf16>
    %cst_38 = arith.constant dense<0.000000e+00> : vector<8x8xf32>
    %127 = tpu.matmul %118, %124, %cst_38 {dimension_numbers = #tpu.dot_dimension_numbers<[1], [1], [0], [0], [0, 0, 1, 0], [], []>} : vector<8x8xbf16>, vector<8x8xbf16>, vector<8x8xf32> -> vector<8x8xf32>
    %128 = arith.addf %127, %16 : vector<8x8xf32>
    %cst_39 = arith.constant dense<0xFF800000> : vector<8xf32>
    %129 = vector.multi_reduction <maximumf>, %128, %cst_39 [1] : vector<8x8xf32> to vector<8xf32>
    %130 = vector.shape_cast %129 : vector<8xf32> to vector<8x1xf32>
    %131 = arith.maximumf %122#0, %130 : vector<8x1xf32>
    %132 = arith.subf %122#0, %131 : vector<8x1xf32>
    %133 = math.exp %132 : vector<8x1xf32>
    %134 = vector.broadcast %131 : vector<8x1xf32> to vector<8x8xf32>
    %135 = arith.subf %128, %134 : vector<8x8xf32>
    %136 = math.exp %135 : vector<8x8xf32>
    %137 = arith.mulf %133, %122#1 : vector<8x1xf32>
    %cst_40 = arith.constant dense<0.000000e+00> : vector<8xf32>
    %138 = vector.multi_reduction <add>, %136, %cst_40 [1] : vector<8x8xf32> to vector<8xf32>
    %139 = vector.shape_cast %138 : vector<8xf32> to vector<8x1xf32>
    %140 = arith.addf %137, %139 : vector<8x1xf32>
    %141 = vector.broadcast %133 : vector<8x1xf32> to vector<8x8xf32>
    %142 = arith.mulf %141, %122#2 : vector<8x8xf32>
    %143 = arith.truncf %136 : vector<8x8xf32> to vector<8x8xbf16>
    %cst_41 = arith.constant dense<0.000000e+00> : vector<8x8xf32>
    %144 = tpu.matmul %143, %126, %cst_41 {dimension_numbers = #tpu.dot_dimension_numbers<[1], [0], [0], [1], [0, 0, 1, 1], [], []>} : vector<8x8xbf16>, vector<8x8xbf16>, vector<8x8xf32> -> vector<8x8xf32>
    %145 = arith.addf %142, %144 : vector<8x8xf32>
    %146 = tpu.reciprocal %140 {approx = true} : vector<8x1xf32> -> vector<8x1xf32>
    %147 = vector.broadcast %146 : vector<8x1xf32> to vector<8x8xf32>
    %148 = arith.mulf %145, %147 : vector<8x8xf32>
    %149 = arith.truncf %148 : vector<8x8xf32> to vector<8x8xbf16>
    %c0_42 = arith.constant 0 : index
    %c24_43 = arith.constant 24 : index
    %150 = vector.load %arg9[%c0_42, %c24_43] : memref<8x32xbf16, #tpu.memory_space<vmem>>, vector<8x8xbf16>
    tpu.vector_store %arg9[%c0_42, %c24_43], %149 {strides = array<i32>} : memref<8x32xbf16, #tpu.memory_space<vmem>>, vector<8x8xbf16>,
    %c0_44 = arith.constant 0 : index
    %c0_45 = arith.constant 0 : index
    %151 = vector.load %arg9[%c0_44, %c0_45] : memref<8x32xbf16, #tpu.memory_space<vmem>>, vector<8x32xbf16>
    %c0_46 = arith.constant 0 : index
    %c0_47 = arith.constant 0 : index
    %152 = vector.load %arg5[%c0_46, %c0_47] : memref<32x32xbf16, #tpu.memory_space<vmem>>, vector<32x32xbf16>
    %cst_48 = arith.constant dense<0.000000e+00> : vector<8x32xf32>
    %153 = tpu.matmul %151, %152, %cst_48 {dimension_numbers = #tpu.dot_dimension_numbers<[1], [0], [0], [1], [0, 0, 1, 1], [], []>} : vector<8x32xbf16>, vector<32x32xbf16>, vector<8x32xf32> -> vector<8x32xf32>
    %c0_49 = arith.constant 0 : index
    %c0_50 = arith.constant 0 : index
    %154 = vector.load %arg6[%c0_49, %c0_50] : memref<1x32xf32, #tpu.memory_space<vmem>>, vector<1x32xf32>
    %155 = vector.broadcast %154 : vector<1x32xf32> to vector<8x32xf32>
    %156 = arith.addf %153, %155 : vector<8x32xf32>
    %c0_51 = arith.constant 0 : index
    %c0_52 = arith.constant 0 : index
    %c0_53 = arith.constant 0 : index
    %157 = vector.load %arg7[%c0_51, %c0_52, %c0_53] : memref<1x8x32xf32, #tpu.memory_space<vmem>>, vector<1x8x32xf32>
    %158 = vector.shape_cast %157 : vector<1x8x32xf32> to vector<8x32xf32>
    %159 = vector.shape_cast %156 : vector<8x32xf32> to vector<1x8x32xf32>
    tpu.vector_store %arg7[%c0_51, %c0_52, %c0_53], %159 {strides = array<i32>} : memref<1x8x32xf32, #tpu.memory_space<vmem>>, vector<1x8x32xf32>,
    return
  }
  func.func @transform_0(%arg0: i32, %arg1: i32) -> (i32, i32, i32) {
    %c0_i32 = arith.constant 0 : i32
    %c0_i32_0 = arith.constant 0 : i32
    %c0_i32_1 = arith.constant 0 : i32
    return %arg0, %c0_i32, %c0_i32_0 : i32, i32, i32
  }
  func.func @transform_1(%arg0: i32, %arg1: i32) -> (i32, i32) {
    %c0_i32 = arith.constant 0 : i32
    %c0_i32_0 = arith.constant 0 : i32
    %c0_i32_1 = arith.constant 0 : i32
    return %c0_i32, %c0_i32_0 : i32, i32
  }
  func.func @transform_2(%arg0: i32, %arg1: i32) -> (i32, i32) {
    %c0_i32 = arith.constant 0 : i32
    %c0_i32_0 = arith.constant 0 : i32
    %c0_i32_1 = arith.constant 0 : i32
    return %c0_i32, %c0_i32_0 : i32, i32
  }
  func.func @transform_3(%arg0: i32, %arg1: i32) -> (i32, i32) {
    %c0_i32 = arith.constant 0 : i32
    %c0_i32_0 = arith.constant 0 : i32
    %c0_i32_1 = arith.constant 0 : i32
    return %c0_i32, %c0_i32_0 : i32, i32
  }
  func.func @transform_4(%arg0: i32, %arg1: i32) -> (i32, i32) {
    %c0_i32 = arith.constant 0 : i32
    %c0_i32_0 = arith.constant 0 : i32
    %c0_i32_1 = arith.constant 0 : i32
    return %c0_i32, %c0_i32_0 : i32, i32
  }
  func.func @transform_5(%arg0: i32, %arg1: i32) -> (i32, i32, i32) {
    %c0_i32 = arith.constant 0 : i32
    %c0_i32_0 = arith.constant 0 : i32
    return %arg0, %arg1, %c0_i32 : i32, i32, i32
  }
}

</mosaic_0001>

<llo_original>
// kernel: tpu_custom_call.1
$region0: #{tpu_custom_call.1}
  #allocation0 [shape = 'u32[]', space=smem, size = 0x4, offset = 0x4, fixed_abs, tag = 'smem constant byte address 0x4 - core index']
  #allocation1 [shape = 'u32[144,128]{1,0:T(1,128)}', space=vmem, size = 0x12000, scoped, tag = 'internal scratch']
  #allocation2 [shape = 'bf16[8,64]{1,0:T(8,128)(2,1)}', space=vmem, size = 0x800, scoped, tag = 'scratch operand']
  #allocation3 [shape = 'bf16[8,32]{1,0:T(8,128)(2,1)}', space=vmem, size = 0x800, scoped, tag = 'scratch operand']
  %s0 = inlined_call_operand.hbm [shape: bf16[2,8,32], index: 0, kind: input, shape index: {}]
  %s1 = inlined_call_operand.hbm [shape: bf16[32,32], index: 1, kind: input, shape index: {}]
  %s2 = inlined_call_operand.hbm [shape: bf16[32,64], index: 2, kind: input, shape index: {}]
  %s3 = inlined_call_operand.hbm [shape: bf16[32,32], index: 3, kind: input, shape index: {}]
  %s4 = inlined_call_operand.vmem [shape: f32[1,32], index: 4, kind: input, shape index: {}]
  %s5 = inlined_call_operand.hbm [shape: f32[2,8,32], index: 5, kind: output, shape index: {}]
  %s6 = sld [smem:[#allocation0]]
  $region101: #{tpu_custom_call.1} parent=0
    _
  %s8 = ssub.s32 1, %s6
  %s9 = scalar_select 0, %s8, %s6
  $region1: #{tpu_custom_call.1} parent=0
    #allocation4 [shape = 'u8[4096]{0}', space=vmem, size = 0x1000, scoped, tag = 'input window, operand 0']
    #allocation5 [shape = 's32[2]{0}', space=sflag, size = 0x8, scoped, tag = 'scoped memory for tpu_custom_call.1']
    #allocation6 [shape = 's32[2]{0}', space=sflag, size = 0x8, scoped, tag = 'scoped memory for tpu_custom_call.1']
    #allocation7 [shape = 'u8[8192]{0}', space=vmem, size = 0x2000, scoped, tag = 'input window, operand 1, single buffered']
    #allocation8 [shape = 's32[1]{0}', space=sflag, size = 0x4, scoped, tag = 'scoped memory for tpu_custom_call.1']
    #allocation9 [shape = 'u8[8192]{0}', space=vmem, size = 0x2000, scoped, tag = 'input window, operand 2, single buffered']
    #allocation10 [shape = 'u8[8192]{0}', space=vmem, size = 0x2000, scoped, tag = 'input window, operand 3, single buffered']
    #allocation11 [shape = 's32[1]{0}', space=sflag, size = 0x4, scoped, tag = 'scoped memory for tpu_custom_call.1']
    #allocation12 [shape = 'u8[8192]{0}', space=vmem, size = 0x2000, scoped, tag = 'output window, operand 0']
    %10 = vsyncpa [#allocation5], 0
    %s11 = scalar_lea.sflag [#allocation5], 1
    %12 = vsyncpa %s11, 0
    %13 = vsyncpa [#allocation8], 0
    %14 = vsyncpa [#allocation11], 0
    %15 = vsyncpa [#allocation6], 0
    %s16 = scalar_lea.sflag [#allocation6], 1
    %17 = vsyncpa %s16, 0
    loop: start=0, step=1, limit=4
    $region2: #{tpu_custom_call.1} parent=1 // loop_pre_header
      _
    $region3: #{tpu_custom_call.1} parent=1 // loop_header
      %s19 = sphi 0, %s23
      %p20 = scmp.ge.s32.totalorder %s19, 4
      %s26 = sphi 0, %s38
      %s27 = sphi 0, %s34
      %s28 = sphi 0, %s26
      %s29 = sphi 0, %s27
      %s30 = sphi 0, %s28
      %s31 = sphi 0, %s29
      %s41 = sphi 0, %s43
      %s44 = sphi 0, %s41
      %s45 = sphi 0, %s44
      %s61 = sphi 0, %s45
      %s65 = sphi 0, %s65
      %s67 = sphi 0, %s65
      %s68 = sphi 0, %s67
      %s82 = sphi 0, %s68
      %s86 = sphi 0, %s86
      %s88 = sphi 0, %s86
      %s89 = sphi 0, %s88
      %s103 = sphi 0, %s89
      %s107 = sphi 0, %s107
      %s109 = sphi 0, %s107
      %s110 = sphi 0, %s109
      %s124 = sphi 0, %s110
      %s128 = sphi 0, %s128
      %s130 = sphi 0, %s128
      %s131 = sphi 0, %s130
      %s145 = sphi 0, %s131
      %s153 = sphi 0, %s155
      %s156 = sphi 0, %s153
      %s157 = sphi 0, %s156
      %s173 = sphi 0, %s157
    $region4: #{tpu_custom_call.1} parent=1 // loop_header_branch
      %22 = sbr.rel (%p20) target = $region8
    $region5: #{tpu_custom_call.1} parent=1 // loop_body
      %s24 = ssub.s32 %s19, 1
      %s25 = ssub.s32 %s19, 2
      %s32 = sadd.s32 1, %s27
      %p33 = scmp.ge.s32.totalorder %s32, 1
      %s34 = scalar_select %p33, 0, %s32
      %s35 = sadd.s32 1, %s26
      %s36 = scalar_select %p33, %s35, %s26
      %p37 = scmp.ge.s32.totalorder %s36, 2
      %s38 = scalar_select %p37, 0, %s36
      %s39 = ssub.s32 %s26, %s38
      %p40 = scmp.eq.s32.totalorder %s39, 0
      %s42 = sadd.s32 %s41, 1
      %s43 = scalar_select %p40, %s41, %s42
      %p46 = pneg %p40
      %p47 = scmp.eq.s32.totalorder %s19, 1
      %p48 = por %p46, %p47
      %p49 = scmp.ne.s32.totalorder %s41, %s44
      %p50 = scmp.eq.s32.totalorder %s19, 0
      %p51 = por %p49, %p50
      %p52 = scmp.ne.s32.totalorder %s41, %s44
      %p53 = scmp.eq.s32.totalorder %s24, 1
      %p54 = por %p52, %p53
      %p55 = scmp.ne.s32.totalorder %s44, %s45
      %p56 = scmp.eq.s32.totalorder %s24, 0
      %p57 = por %p55, %p56
      %p58 = scmp.ne.s32.totalorder %s44, %s45
      %p59 = scmp.eq.s32.totalorder %s25, 1
      %p60 = por %p58, %p59
      %p62 = scmp.ne.s32.totalorder %s45, %s61
      %p63 = scmp.eq.s32.totalorder %s25, 0
      %p64 = por %p62, %p63
      %s66 = sadd.s32 %s65, 1
      %p69 = scmp.eq.s32.totalorder %s19, 1
      %p70 = scmp.ne.s32.totalorder %s65, %s67
      %p71 = scmp.eq.s32.totalorder %s19, 0
      %p72 = por %p70, %p71
      %p73 = scmp.ne.s32.totalorder %s65, %s67
      %p74 = scmp.eq.s32.totalorder %s24, 1
      %p75 = por %p73, %p74
      %p76 = scmp.ne.s32.totalorder %s67, %s68
      %p77 = scmp.eq.s32.totalorder %s24, 0
      %p78 = por %p76, %p77
      %p79 = scmp.ne.s32.totalorder %s67, %s68
      %p80 = scmp.eq.s32.totalorder %s25, 1
      %p81 = por %p79, %p80
      %p83 = scmp.ne.s32.totalorder %s68, %s82
      %p84 = scmp.eq.s32.totalorder %s25, 0
      %p85 = por %p83, %p84
      %s87 = sadd.s32 %s86, 1
      %p90 = scmp.eq.s32.totalorder %s19, 1
      %p91 = scmp.ne.s32.totalorder %s86, %s88
      %p92 = scmp.eq.s32.totalorder %s19, 0
      %p93 = por %p91, %p92
      %p94 = scmp.ne.s32.totalorder %s86, %s88
      %p95 = scmp.eq.s32.totalorder %s24, 1
      %p96 = por %p94, %p95
      %p97 = scmp.ne.s32.totalorder %s88, %s89
      %p98 = scmp.eq.s32.totalorder %s24, 0
      %p99 = por %p97, %p98
      %p100 = scmp.ne.s32.totalorder %s88, %s89
      %p101 = scmp.eq.s32.totalorder %s25, 1
      %p102 = por %p100, %p101
      %p104 = scmp.ne.s32.totalorder %s89, %s103
      %p105 = scmp.eq.s32.totalorder %s25, 0
      %p106 = por %p104, %p105
      %s108 = sadd.s32 %s107, 1
      %p111 = scmp.eq.s32.totalorder %s19, 1
      %p112 = scmp.ne.s32.totalorder %s107, %s109
      %p113 = scmp.eq.s32.totalorder %s19, 0
      %p114 = por %p112, %p113
      %p115 = scmp.ne.s32.totalorder %s107, %s109
      %p116 = scmp.eq.s32.totalorder %s24, 1
      %p117 = por %p115, %p116
      %p118 = scmp.ne.s32.totalorder %s109, %s110
      %p119 = scmp.eq.s32.totalorder %s24, 0
      %p120 = por %p118, %p119
      %p121 = scmp.ne.s32.totalorder %s109, %s110
      %p122 = scmp.eq.s32.totalorder %s25, 1
      %p123 = por %p121, %p122
      %p125 = scmp.ne.s32.totalorder %s110, %s124
      %p126 = scmp.eq.s32.totalorder %s25, 0
      %p127 = por %p125, %p126
      %s129 = sadd.s32 %s128, 1
      %p132 = scmp.eq.s32.totalorder %s19, 1
      %p133 = scmp.ne.s32.totalorder %s128, %s130
      %p134 = scmp.eq.s32.totalorder %s19, 0
      %p135 = por %p133, %p134
      %p136 = scmp.ne.s32.totalorder %s128, %s130
      %p137 = scmp.eq.s32.totalorder %s24, 1
      %p138 = por %p136, %p137
      %p139 = scmp.ne.s32.totalorder %s130, %s131
      %p140 = scmp.eq.s32.totalorder %s24, 0
      %p141 = por %p139, %p140
      %p142 = scmp.ne.s32.totalorder %s130, %s131
      %p143 = scmp.eq.s32.totalorder %s25, 1
      %p144 = por %p142, %p143
      %p146 = scmp.ne.s32.totalorder %s131, %s145
      %p147 = scmp.eq.s32.totalorder %s25, 0
      %p148 = por %p146, %p147
      %s149 = ssub.s32 %s26, %s38
      %s150 = ssub.s32 %s27, %s34
      %s151 = sor.u32 %s149, %s150
      %p152 = scmp.eq.s32.totalorder %s151, 0
      %s154 = sadd.s32 %s153, 1
      %s155 = scalar_select %p152, %s153, %s154
      %p158 = pneg %p152
      %p159 = scmp.eq.s32.totalorder %s19, 1
      %p160 = por %p158, %p159
      %p161 = scmp.ne.s32.totalorder %s153, %s156
      %p162 = scmp.eq.s32.totalorder %s19, 0
      %p163 = por %p161, %p162
      %p164 = scmp.ne.s32.totalorder %s153, %s156
      %p165 = scmp.eq.s32.totalorder %s24, 1
      %p166 = por %p164, %p165
      %p167 = scmp.ne.s32.totalorder %s156, %s157
      %p168 = scmp.eq.s32.totalorder %s24, 0
      %p169 = por %p167, %p168
      %p170 = scmp.ne.s32.totalorder %s156, %s157
      %p171 = scmp.eq.s32.totalorder %s25, 1
      %p172 = por %p170, %p171
      %p174 = scmp.ne.s32.totalorder %s157, %s173
      %p175 = scmp.eq.s32.totalorder %s25, 0
      %p176 = por %p174, %p175
      %p177 = scmp.le.s32.totalorder 1, %s19
      %p178 = scmp.lt.s32.totalorder %s19, 3
      %p179 = pnand %p177, %p178
      %p180 = pneg %p179
      // Predicated region
      $region9: #{tpu_custom_call.1} parent=5 // pred_check
        _
      $region10: #{tpu_custom_call.1} parent=5 // pred_check_branch
        %182 = sbr.rel (%p179) target = $region12
      $region11: #{tpu_custom_call.1} parent=5 // pred_region
        %s183 = ssub.s32 %s19, 1
        // Predicated region
        $region13: #{tpu_custom_call.1} parent=11 // pred_check
          %p184 = pneg %p78
        $region14: #{tpu_custom_call.1} parent=11 // pred_check_branch
          %186 = sbr.rel (%p184) target = $region16
        $region15: #{tpu_custom_call.1} parent=11 // pred_region
          %s188 = ssub.s32 256, 256
          %189 = vsyncadd [#allocation8], %s188
          %s190 = sshll.u32 [#allocation7], 4
          %s191 = int_to_ptr.vmem [resolvable:$true] %s190
          %196 = dma.hbm_to_vmem [thread:$0]  %s1, 256, %s191, [#allocation8], 64, 64, 4
        $region16: #{tpu_custom_call.1} parent=11 // pred_fallthru
          _
        // Predicated region
        $region17: #{tpu_custom_call.1} parent=11 // pred_check
          %p197 = pneg %p99
        $region18: #{tpu_custom_call.1} parent=11 // pred_check_branch
          %199 = sbr.rel (%p197) target = $region20
        $region19: #{tpu_custom_call.1} parent=11 // pred_region
          %s201 = ssub.s32 256, 256
          %202 = vsyncadd [#allocation8], %s201
          %s203 = sshll.u32 [#allocation9], 4
          %s204 = int_to_ptr.vmem [resolvable:$true] %s203
          %209 = dma.hbm_to_vmem [thread:$0]  %s2, 256, %s204, [#allocation8], 64, 64, 4
        $region20: #{tpu_custom_call.1} parent=11 // pred_fallthru
          _
        // Predicated region
        $region21: #{tpu_custom_call.1} parent=11 // pred_check
          %p210 = pneg %p120
        $region22: #{tpu_custom_call.1} parent=11 // pred_check_branch
          %212 = sbr.rel (%p210) target = $region24
        $region23: #{tpu_custom_call.1} parent=11 // pred_region
          %s214 = ssub.s32 256, 256
          %215 = vsyncadd [#allocation11], %s214
          %s216 = sshll.u32 [#allocation10], 4
          %s217 = int_to_ptr.vmem [resolvable:$true] %s216
          %222 = dma.hbm_to_vmem [thread:$0]  %s3, 256, %s217, [#allocation11], 64, 64, 4
        $region24: #{tpu_custom_call.1} parent=11 // pred_fallthru
          _
        // Predicated region
        $region25: #{tpu_custom_call.1} parent=11 // pred_check
          %p223 = pneg %p141
        $region26: #{tpu_custom_call.1} parent=11 // pred_check_branch
          %225 = sbr.rel (%p223) target = $region28
        $region27: #{tpu_custom_call.1} parent=11 // pred_region
          _
        $region28: #{tpu_custom_call.1} parent=11 // pred_fallthru
          _
      $region12: #{tpu_custom_call.1} parent=5 // pred_fallthru
        _
      %p226 = scmp.lt.s32.totalorder %s19, 2
      // Predicated region
      $region29: #{tpu_custom_call.1} parent=5 // pred_check
        %p227 = pneg %p226
      $region30: #{tpu_custom_call.1} parent=5 // pred_check_branch
        %229 = sbr.rel (%p227) target = $region32
      $region31: #{tpu_custom_call.1} parent=5 // pred_region
        // Predicated region
        $region33: #{tpu_custom_call.1} parent=31 // pred_check
          %p230 = pneg %p51
        $region34: #{tpu_custom_call.1} parent=31 // pred_check_branch
          %232 = sbr.rel (%p230) target = $region36
        $region35: #{tpu_custom_call.1} parent=31 // pred_region
          %s233 = sand.u32 %s41, 1
          %s234 = scalar_lea.sflag [#allocation5], %s233
          %s235 = sand.u32 %s41, 1
          %s236 = smul.addr %s235, 4
          %s237 = scalar_lea.vmem [#allocation4], %s236
          %s239 = ssub.s32 64, 64
          %240 = vsyncadd %s234, %s239
          %s241 = smul.addr %s26, 64
          %s242 = scalar_lea.hbm %s0, %s241
          %s244 = sshll.u32 %s237, 4
          %s245 = int_to_ptr.vmem [resolvable:$true] %s244
          %247 = dma.hbm_to_vmem [thread:$0]  %s242, 64, %s245, %s234
        $region36: #{tpu_custom_call.1} parent=31 // pred_fallthru
          _
      $region32: #{tpu_custom_call.1} parent=5 // pred_fallthru
        _
      %p248 = scmp.le.s32.totalorder 1, %s19
      %p249 = scmp.lt.s32.totalorder %s19, 3
      %p250 = pnand %p248, %p249
      %p251 = pneg %p250
      // Predicated region
      $region37: #{tpu_custom_call.1} parent=5 // pred_check
        _
      $region38: #{tpu_custom_call.1} parent=5 // pred_check_branch
        %253 = sbr.rel (%p250) target = $region40
      $region39: #{tpu_custom_call.1} parent=5 // pred_region
        %s254 = ssub.s32 %s19, 1
        %s255 = sand.u32 %s44, 1
        %s256 = scalar_lea.sflag [#allocation5], %s255
        %s257 = sand.u32 %s44, 1
        %s258 = smul.addr %s257, 4
        %s259 = scalar_lea.vmem [#allocation4], %s258
        // Predicated region
        $region41: #{tpu_custom_call.1} parent=39 // pred_check
          %p260 = pneg %p57
        $region42: #{tpu_custom_call.1} parent=39 // pred_check_branch
          %262 = sbr.rel (%p260) target = $region44
        $region43: #{tpu_custom_call.1} parent=39 // pred_region
          %263 = dma.done %s256, 64
        $region44: #{tpu_custom_call.1} parent=39 // pred_fallthru
          _
        // Predicated region
        $region45: #{tpu_custom_call.1} parent=39 // pred_check
          %p264 = pneg %p78
        $region46: #{tpu_custom_call.1} parent=39 // pred_check_branch
          %266 = sbr.rel (%p264) target = $region48
        $region47: #{tpu_custom_call.1} parent=39 // pred_region
          %267 = dma.done [#allocation8], 256
        $region48: #{tpu_custom_call.1} parent=39 // pred_fallthru
          _
        // Predicated region
        $region49: #{tpu_custom_call.1} parent=39 // pred_check
          %p268 = pneg %p99
        $region50: #{tpu_custom_call.1} parent=39 // pred_check_branch
          %270 = sbr.rel (%p268) target = $region52
        $region51: #{tpu_custom_call.1} parent=39 // pred_region
          %271 = dma.done [#allocation8], 256
        $region52: #{tpu_custom_call.1} parent=39 // pred_fallthru
          _
        // Predicated region
        $region53: #{tpu_custom_call.1} parent=39 // pred_check
          %p272 = pneg %p120
        $region54: #{tpu_custom_call.1} parent=39 // pred_check_branch
          %274 = sbr.rel (%p272) target = $region56
        $region55: #{tpu_custom_call.1} parent=39 // pred_region
          %275 = dma.done [#allocation11], 256
        $region56: #{tpu_custom_call.1} parent=39 // pred_fallthru
          _
        %s276 = sand.u32 %s44, 1
        %s277 = scalar_lea.sflag [#allocation5], %s276
        %s278 = sand.u32 %s44, 1
        %s279 = smul.addr %s278, 4
        %s280 = scalar_lea.vmem [#allocation4], %s279
        %p281 = pneg %p57
        %p282 = pneg %p54
        %p283 = pneg %p78
        %p284 = pneg %p75
        %p285 = pneg %p99
        %p286 = pneg %p96
        %p287 = pneg %p120
        %p288 = pneg %p117
        %p289 = pneg %p141
        %p290 = pneg %p138
        %p291 = pneg %p169
        %p292 = pneg %p166
        %s293 = sand.u32 %s156, 1
        %s294 = scalar_lea.sflag [#allocation6], %s293
        %s295 = sand.u32 %s156, 1
        %s296 = smul.addr %s295, 8
        %s297 = scalar_lea.vmem [#allocation12], %s296
        %p299 = scmp.eq.s32.totalorder %s29, 0
        // Predicated region
        $region57: #{tpu_custom_call.1} parent=39 // pred_check
          %p300 = pneg %p299
        $region58: #{tpu_custom_call.1} parent=39 // pred_check_branch
          %302 = sbr.rel (%p300) target = $region60
        $region59: #{tpu_custom_call.1} parent=39 // pred_region
          %v303 = vld [vmem:[%s259] sm:$0xf]
          %v304 = vld [vmem:[#allocation9] sm:$0xf]
          %v305 = vld [vmem:[#allocation9 + $0x4] sm:$0xf]
          %v306 = vld [vmem:[#allocation9 + $0x8] sm:$0xf]
          %v307 = vld [vmem:[#allocation9 + $0xc] sm:$0xf]
          %v312 = vunpack.c.l.b16 %v304
          %v313 = vunpack.c.l.b16 %v305
          %v314 = vunpack.c.l.b16 %v306
          %v315 = vunpack.c.l.b16 %v307
          %v316 = vpack.c.b16 %v313, %v312
          %v317 = vpack.c.b16 %v315, %v314
          %vm320 = vcmask 261120
          %v322 = vsel %vm320, %v303, 0
          %324 = vmatprep.subr.bf16.mxu0 0
          %325 = vmatpush1.bf16.msra.mxu0 %v316
          %326 = vmatprep.subr.bf16.mxu0 0
          %327 = vmatpush1.bf16.msra.mxu0 %v317
          %328 = vmatprep.subr.bf16.mxu0 0
          %329 = vmatpush1.bf16.msra.mxu0 0
          %330 = vmatprep.subr.bf16.mxu0 0
          %331 = vmatpush1.bf16.msra.mxu0 0
          %332 = vmatprep.subr.bf16.mxu0 0
          %333 = vmatpush1.bf16.msra.mxu0 0
          %334 = vmatprep.subr.bf16.mxu0 0
          %335 = vmatpush1.bf16.msra.mxu0 0
          %336 = vmatprep.subr.bf16.mxu0 0
          %337 = vmatpush1.bf16.msra.mxu0 0
          %338 = vmatprep.subr.bf16.mxu0 0
          %339 = vmatpush1.bf16.msra.mxu0 0
          %340 = vmatprep.subr.bf16.mxu0 0
          %341 = vmatpush1.bf16.msra.mxu0 0
          %342 = vmatprep.subr.bf16.mxu0 0
          %343 = vmatpush1.bf16.msra.mxu0 0
          %344 = vmatprep.subr.bf16.mxu0 0
          %345 = vmatpush1.bf16.msra.mxu0 0
          %346 = vmatprep.subr.bf16.mxu0 0
          %347 = vmatpush1.bf16.msra.mxu0 0
          %348 = vmatprep.subr.bf16.mxu0 0
          %349 = vmatpush1.bf16.msra.mxu0 0
          %350 = vmatprep.subr.bf16.mxu0 0
          %351 = vmatpush1.bf16.msra.mxu0 0
          %352 = vmatprep.subr.bf16.mxu0 0
          %353 = vmatpush1.bf16.msra.mxu0 0
          %354 = vmatprep.subr.bf16.mxu0 0
          %355 = vmatpush1.bf16.msra.mxu0 0
          %356 = vmatprep.mubr.bf16.mxu0 0
          %357 = vmatmul.mubr.bf16.gmra.mrb[0].mxu0 %v322
          %v358 = vpop.f32.mrb[0].mxu0
          %v359 = vadd.f32 0.0, %v358
          %v360 = vpop.f32.mrb[0].mxu0
          %v361 = vpop.f32.mrb[0].mxu0
          %v362 = vpop.f32.mrb[0].mxu0
          %363 = vdwg.mxu0
          %v364 = vpack.c.bf16 %v359, %v359
          %vm365 = vcmask 519168
          %366 = vst.msk [vmem:[#allocation2] sm:$0xf] %vm365, %v364
        $region60: #{tpu_custom_call.1} parent=39 // pred_fallthru
          _
        %s367 = smul.u32 %s29, 8
        %s368 = sshra.s32 %s367, 3
        %s369 = sand.u32 %s367, 7
        %s370 = smul.addr %s368, 4
        %s371 = scalar_lea.vmem %s259, %s370 [#allocation4]
        %v372 = vld [vmem:[%s371] sm:$0xf]
        %v373 = vld [vmem:[#allocation7] sm:$0xf]
        %v374 = vld [vmem:[#allocation7 + $0x4] sm:$0xf]
        %v375 = vld [vmem:[#allocation7 + $0x8] sm:$0xf]
        %v376 = vld [vmem:[#allocation7 + $0xc] sm:$0xf]
        %v381 = vunpack.c.l.b16 %v373
        %v382 = vunpack.c.l.b16 %v374
        %v383 = vunpack.c.l.b16 %v375
        %v384 = vunpack.c.l.b16 %v376
        %v385 = vpack.c.b16 %v382, %v381
        %v386 = vpack.c.b16 %v384, %v383
        %vm389 = vcmask 261120
        %v391 = vsel %vm389, %v372, 0
        %393 = vmatprep.subr.bf16.mxu0 0
        %394 = vmatpush1.bf16.msra.mxu0 %v385
        %395 = vmatprep.subr.bf16.mxu0 0
        %396 = vmatpush1.bf16.msra.mxu0 %v386
        %397 = vmatprep.subr.bf16.mxu0 0
        %398 = vmatpush1.bf16.msra.mxu0 0
        %399 = vmatprep.subr.bf16.mxu0 0
        %400 = vmatpush1.bf16.msra.mxu0 0
        %401 = vmatprep.subr.bf16.mxu0 0
        %402 = vmatpush1.bf16.msra.mxu0 0
        %403 = vmatprep.subr.bf16.mxu0 0
        %404 = vmatpush1.bf16.msra.mxu0 0
        %405 = vmatprep.subr.bf16.mxu0 0
        %406 = vmatpush1.bf16.msra.mxu0 0
        %407 = vmatprep.subr.bf16.mxu0 0
        %408 = vmatpush1.bf16.msra.mxu0 0
        %409 = vmatprep.subr.bf16.mxu0 0
        %410 = vmatpush1.bf16.msra.mxu0 0
        %411 = vmatprep.subr.bf16.mxu0 0
        %412 = vmatpush1.bf16.msra.mxu0 0
        %413 = vmatprep.subr.bf16.mxu0 0
        %414 = vmatpush1.bf16.msra.mxu0 0
        %415 = vmatprep.subr.bf16.mxu0 0
        %416 = vmatpush1.bf16.msra.mxu0 0
        %417 = vmatprep.subr.bf16.mxu0 0
        %418 = vmatpush1.bf16.msra.mxu0 0
        %419 = vmatprep.subr.bf16.mxu0 0
        %420 = vmatpush1.bf16.msra.mxu0 0
        %421 = vmatprep.subr.bf16.mxu0 0
        %422 = vmatpush1.bf16.msra.mxu0 0
        %423 = vmatprep.subr.bf16.mxu0 0
        %424 = vmatpush1.bf16.msra.mxu0 0
        %425 = vmatprep.mubr.bf16.mxu0 0
        %426 = vmatmul.mubr.bf16.gmra.mrb[0].mxu0 %v391
        %v427 = vpop.f32.mrb[0].mxu0
        %v428 = vadd.f32 0.0, %v427
        %v429 = vpop.f32.mrb[0].mxu0
        %v430 = vpop.f32.mrb[0].mxu0
        %v431 = vpop.f32.mrb[0].mxu0
        %432 = vdwg.mxu0
        %v433 = vpack.c.bf16 %v428, %v428
        %v434 = vlaneseq
        %v435 = vshrl.u32 %v434, 7
        %v436 = vlaneseq
        %v437 = vand.u32 %v436, 127
        %vm438 = vcmp.le.s32.totalorder %v437, %v435
        %v439 = vsel %vm438, 0.0, -1e+30
        // While loop
        $region61: #{tpu_custom_call.1} parent=39 // loop_pre_header
          _
        $region62: #{tpu_custom_call.1} parent=39 // loop_header
          %s441 = sphi 0, %s443
          %p442 = scmp.ge.s32.totalorder %s441, %s29
          %v446 = vphi -1e+30, %v505
          %v447 = vphi 0.0, %v516
          %v448 = vphi 0.0, %v571
        $region63: #{tpu_custom_call.1} parent=39 // loop_header_branch
          %445 = sbr.rel (%p442) target = $region67
        $region64: #{tpu_custom_call.1} parent=39 // loop_body
          %s449 = smul.u32 %s441, 8
          %s450 = sshra.s32 %s449, 3
          %s451 = sand.u32 %s449, 7
          %s452 = smul.addr %s450, 4
          %s453 = scalar_lea.vmem [#allocation2], %s452
          %v454 = vld [vmem:[%s453] sm:$0xf]
          %vm455 = vcmask 64512
          %v457 = vsel %vm455, %v433, 0
          %v460 = vsel %vm455, %v454, 0
          %462 = vmatprep.subr.bf16.mxu0 0
          %463 = vmatpush1.bf16.xpose.msra.mxu0 %v460
          %464 = vmatprep.subr.bf16.mxu0 0
          %465 = vmatpush1.bf16.xpose.msra.mxu0 0
          %466 = vmatprep.subr.bf16.mxu0 0
          %467 = vmatpush1.bf16.xpose.msra.mxu0 0
          %468 = vmatprep.subr.bf16.mxu0 0
          %469 = vmatpush1.bf16.xpose.msra.mxu0 0
          %470 = vmatprep.subr.bf16.mxu0 0
          %471 = vmatpush1.bf16.xpose.msra.mxu0 0
          %472 = vmatprep.subr.bf16.mxu0 0
          %473 = vmatpush1.bf16.xpose.msra.mxu0 0
          %474 = vmatprep.subr.bf16.mxu0 0
          %475 = vmatpush1.bf16.xpose.msra.mxu0 0
          %476 = vmatprep.subr.bf16.mxu0 0
          %477 = vmatpush1.bf16.xpose.msra.mxu0 0
          %478 = vmatprep.subr.bf16.mxu0 0
          %479 = vmatpush1.bf16.xpose.msra.mxu0 0
          %480 = vmatprep.subr.bf16.mxu0 0
          %481 = vmatpush1.bf16.xpose.msra.mxu0 0
          %482 = vmatprep.subr.bf16.mxu0 0
          %483 = vmatpush1.bf16.xpose.msra.mxu0 0
          %484 = vmatprep.subr.bf16.mxu0 0
          %485 = vmatpush1.bf16.xpose.msra.mxu0 0
          %486 = vmatprep.subr.bf16.mxu0 0
          %487 = vmatpush1.bf16.xpose.msra.mxu0 0
          %488 = vmatprep.subr.bf16.mxu0 0
          %489 = vmatpush1.bf16.xpose.msra.mxu0 0
          %490 = vmatprep.subr.bf16.mxu0 0
          %491 = vmatpush1.bf16.xpose.msra.mxu0 0
          %492 = vmatprep.subr.bf16.mxu0 0
          %493 = vmatpush1.bf16.xpose.msra.mxu0 0
          %494 = vmatprep.mubr.bf16.mxu0 0
          %495 = vmatmul.mubr.bf16.gmra.mrb[0].mxu0 %v457
          %v496 = vpop.f32.mrb[0].mxu0
          %v497 = vadd.f32 0.0, %v496
          %v498 = vpop.f32.mrb[0].mxu0
          %v499 = vpop.f32.mrb[0].mxu0
          %v500 = vpop.f32.mrb[0].mxu0
          %501 = vdwg.mxu0
          %v502 = vsel %vm455, %v497, -inf
          %503 = vmax.xlane.f32.xlu0 %v502
          %v504 = vpop.xlane.xlu0 %503
          %v505 = vmax.f32 %v446, %v504
          %v506 = vsub.f32 %v446, %v505
          %v507 = vmul.f32 %v506, 1.442695
          %v508 = vpow.pop %v507
          %v509 = vsub.f32 %v497, %v505
          %v510 = vmul.f32 %v509, 1.442695
          %v511 = vpow.pop %v510
          %v512 = vmul.f32 %v508, %v447
          %v513 = vsel %vm455, %v511, 0.0
          %514 = vadd.xlane.f32.xlu0 %v513
          %v515 = vpop.xlane.xlu0 %514
          %v516 = vadd.f32 %v512, %v515
          %v517 = vmul.f32 %v508, %v448
          %v518 = vpack.c.bf16 %v511, %v511
          %v520 = vunpack.c.l.b16 %v454
          %v521 = vpack.c.b16 %v520, %v520
          %522 = vrot.lane.b32.xlu0 %v521, 96
          %v523 = vpop.permute.xlu0 %522
          %v525 = vsel %vm455, %v518, 0
          %vm527 = vcmask 1043456
          %v529 = vsel %vm527, %v523, 0
          %531 = vmatprep.subr.bf16.mxu0 0
          %532 = vmatpush1.bf16.msra.mxu0 %v529
          %533 = vmatprep.subr.bf16.mxu0 0
          %534 = vmatpush1.bf16.msra.mxu0 0
          %535 = vmatprep.subr.bf16.mxu0 0
          %536 = vmatpush1.bf16.msra.mxu0 0
          %537 = vmatprep.subr.bf16.mxu0 0
          %538 = vmatpush1.bf16.msra.mxu0 0
          %539 = vmatprep.subr.bf16.mxu0 0
          %540 = vmatpush1.bf16.msra.mxu0 0
          %541 = vmatprep.subr.bf16.mxu0 0
          %542 = vmatpush1.bf16.msra.mxu0 0
          %543 = vmatprep.subr.bf16.mxu0 0
          %544 = vmatpush1.bf16.msra.mxu0 0
          %545 = vmatprep.subr.bf16.mxu0 0
          %546 = vmatpush1.bf16.msra.mxu0 0
          %547 = vmatprep.subr.bf16.mxu0 0
          %548 = vmatpush1.bf16.msra.mxu0 0
          %549 = vmatprep.subr.bf16.mxu0 0
          %550 = vmatpush1.bf16.msra.mxu0 0
          %551 = vmatprep.subr.bf16.mxu0 0
          %552 = vmatpush1.bf16.msra.mxu0 0
          %553 = vmatprep.subr.bf16.mxu0 0
          %554 = vmatpush1.bf16.msra.mxu0 0
          %555 = vmatprep.subr.bf16.mxu0 0
          %556 = vmatpush1.bf16.msra.mxu0 0
          %557 = vmatprep.subr.bf16.mxu0 0
          %558 = vmatpush1.bf16.msra.mxu0 0
          %559 = vmatprep.subr.bf16.mxu0 0
          %560 = vmatpush1.bf16.msra.mxu0 0
          %561 = vmatprep.subr.bf16.mxu0 0
          %562 = vmatpush1.bf16.msra.mxu0 0
          %563 = vmatprep.mubr.bf16.mxu0 0
          %564 = vmatmul.mubr.bf16.gmra.mrb[0].mxu0 %v525
          %v565 = vpop.f32.mrb[0].mxu0
          %v566 = vadd.f32 0.0, %v565
          %v567 = vpop.f32.mrb[0].mxu0
          %v568 = vpop.f32.mrb[0].mxu0
          %v569 = vpop.f32.mrb[0].mxu0
          %570 = vdwg.mxu0
          %v571 = vadd.f32 %v517, %v566
        $region65: #{tpu_custom_call.1} parent=39 // loop_footer
          %s443 = sadd.s32 %s441, 1
        $region66: #{tpu_custom_call.1} parent=39 // loop_footer_branch
          %440 = sbr.rel target = $region62
        $region67: #{tpu_custom_call.1} parent=39 // loop_exit
          _
        %s572 = smul.addr %s368, 4
        %s573 = scalar_lea.vmem [#allocation2], %s572
        %v574 = vld [vmem:[%s573] sm:$0xf]
        %vm575 = vcmask 64512
        %v577 = vsel %vm575, %v433, 0
        %v580 = vsel %vm575, %v574, 0
        %582 = vmatprep.subr.bf16.mxu0 0
        %583 = vmatpush1.bf16.xpose.msra.mxu0 %v580
        %584 = vmatprep.subr.bf16.mxu0 0
        %585 = vmatpush1.bf16.xpose.msra.mxu0 0
        %586 = vmatprep.subr.bf16.mxu0 0
        %587 = vmatpush1.bf16.xpose.msra.mxu0 0
        %588 = vmatprep.subr.bf16.mxu0 0
        %589 = vmatpush1.bf16.xpose.msra.mxu0 0
        %590 = vmatprep.subr.bf16.mxu0 0
        %591 = vmatpush1.bf16.xpose.msra.mxu0 0
        %592 = vmatprep.subr.bf16.mxu0 0
        %593 = vmatpush1.bf16.xpose.msra.mxu0 0
        %594 = vmatprep.subr.bf16.mxu0 0
        %595 = vmatpush1.bf16.xpose.msra.mxu0 0
        %596 = vmatprep.subr.bf16.mxu0 0
        %597 = vmatpush1.bf16.xpose.msra.mxu0 0
        %598 = vmatprep.subr.bf16.mxu0 0
        %599 = vmatpush1.bf16.xpose.msra.mxu0 0
        %600 = vmatprep.subr.bf16.mxu0 0
        %601 = vmatpush1.bf16.xpose.msra.mxu0 0
        %602 = vmatprep.subr.bf16.mxu0 0
        %603 = vmatpush1.bf16.xpose.msra.mxu0 0
        %604 = vmatprep.subr.bf16.mxu0 0
        %605 = vmatpush1.bf16.xpose.msra.mxu0 0
        %606 = vmatprep.subr.bf16.mxu0 0
        %607 = vmatpush1.bf16.xpose.msra.mxu0 0
        %608 = vmatprep.subr.bf16.mxu0 0
        %609 = vmatpush1.bf16.xpose.msra.mxu0 0
        %610 = vmatprep.subr.bf16.mxu0 0
        %611 = vmatpush1.bf16.xpose.msra.mxu0 0
        %612 = vmatprep.subr.bf16.mxu0 0
        %613 = vmatpush1.bf16.xpose.msra.mxu0 0
        %614 = vmatprep.mubr.bf16.mxu0 0
        %615 = vmatmul.mubr.bf16.gmra.mrb[0].mxu0 %v577
        %v616 = vpop.f32.mrb[0].mxu0
        %v617 = vadd.f32 %v439, %v616
        %v618 = vpop.f32.mrb[0].mxu0
        %v619 = vpop.f32.mrb[0].mxu0
        %v620 = vpop.f32.mrb[0].mxu0
        %621 = vdwg.mxu0
        %v622 = vsel %vm575, %v617, -inf
        %623 = vmax.xlane.f32.xlu0 %v622
        %v624 = vpop.xlane.xlu0 %623
        %v625 = vmax.f32 %v446, %v624
        %v626 = vsub.f32 %v446, %v625
        %v627 = vmul.f32 %v626, 1.442695
        %v628 = vpow.pop %v627
        %v629 = vsub.f32 %v617, %v625
        %v630 = vmul.f32 %v629, 1.442695
        %v631 = vpow.pop %v630
        %v632 = vmul.f32 %v628, %v447
        %v633 = vsel %vm575, %v631, 0.0
        %634 = vadd.xlane.f32.xlu0 %v633
        %v635 = vpop.xlane.xlu0 %634
        %v636 = vadd.f32 %v632, %v635
        %v637 = vmul.f32 %v628, %v448
        %v638 = vpack.c.bf16 %v631, %v631
        %v640 = vunpack.c.l.b16 %v574
        %v641 = vpack.c.b16 %v640, %v640
        %642 = vrot.lane.b32.xlu0 %v641, 96
        %v643 = vpop.permute.xlu0 %642
        %v645 = vsel %vm575, %v638, 0
        %vm647 = vcmask 1043456
        %v649 = vsel %vm647, %v643, 0
        %651 = vmatprep.subr.bf16.mxu0 0
        %652 = vmatpush1.bf16.msra.mxu0 %v649
        %653 = vmatprep.subr.bf16.mxu0 0
        %654 = vmatpush1.bf16.msra.mxu0 0
        %655 = vmatprep.subr.bf16.mxu0 0
        %656 = vmatpush1.bf16.msra.mxu0 0
        %657 = vmatprep.subr.bf16.mxu0 0
        %658 = vmatpush1.bf16.msra.mxu0 0
        %659 = vmatprep.subr.bf16.mxu0 0
        %660 = vmatpush1.bf16.msra.mxu0 0
        %661 = vmatprep.subr.bf16.mxu0 0
        %662 = vmatpush1.bf16.msra.mxu0 0
        %663 = vmatprep.subr.bf16.mxu0 0
        %664 = vmatpush1.bf16.msra.mxu0 0
        %665 = vmatprep.subr.bf16.mxu0 0
        %666 = vmatpush1.bf16.msra.mxu0 0
        %667 = vmatprep.subr.bf16.mxu0 0
        %668 = vmatpush1.bf16.msra.mxu0 0
        %669 = vmatprep.subr.bf16.mxu0 0
        %670 = vmatpush1.bf16.msra.mxu0 0
        %671 = vmatprep.subr.bf16.mxu0 0
        %672 = vmatpush1.bf16.msra.mxu0 0
        %673 = vmatprep.subr.bf16.mxu0 0
        %674 = vmatpush1.bf16.msra.mxu0 0
        %675 = vmatprep.subr.bf16.mxu0 0
        %676 = vmatpush1.bf16.msra.mxu0 0
        %677 = vmatprep.subr.bf16.mxu0 0
        %678 = vmatpush1.bf16.msra.mxu0 0
        %679 = vmatprep.subr.bf16.mxu0 0
        %680 = vmatpush1.bf16.msra.mxu0 0
        %681 = vmatprep.subr.bf16.mxu0 0
        %682 = vmatpush1.bf16.msra.mxu0 0
        %683 = vmatprep.mubr.bf16.mxu0 0
        %684 = vmatmul.mubr.bf16.gmra.mrb[0].mxu0 %v645
        %v685 = vpop.f32.mrb[0].mxu0
        %v686 = vadd.f32 0.0, %v685
        %v687 = vpop.f32.mrb[0].mxu0
        %v688 = vpop.f32.mrb[0].mxu0
        %v689 = vpop.f32.mrb[0].mxu0
        %690 = vdwg.mxu0
        %v691 = vadd.f32 %v637, %v686
        %v692 = vrcp.pop %v636
        %v693 = vmul.f32 %v691, %v692
        %v694 = vpack.c.bf16 %v693, %v693
        %vm695 = vcmask 60416
        %696 = vst.msk [vmem:[#allocation3] sm:$0xf] %vm695, %v694
        // While loop
        $region68: #{tpu_custom_call.1} parent=39 // loop_pre_header
          _
        $region69: #{tpu_custom_call.1} parent=39 // loop_header
          %s698 = sphi 0, %s700
          %p699 = scmp.ge.s32.totalorder %s698, %s29
          %v703 = vphi -1e+30, %v769
          %v704 = vphi 0.0, %v780
          %v705 = vphi 0.0, %v831
        $region70: #{tpu_custom_call.1} parent=39 // loop_header_branch
          %702 = sbr.rel (%p699) target = $region74
        $region71: #{tpu_custom_call.1} parent=39 // loop_body
          %s706 = smul.u32 %s698, 8
          %s707 = sshra.s32 %s706, 3
          %s708 = sand.u32 %s706, 7
          %s709 = smul.addr %s707, 4
          %s710 = scalar_lea.vmem [#allocation2], %s709
          %v711 = vld [vmem:[%s710] sm:$0xf]
          %713 = vrot.lane.b32.xlu0 %v433, 120
          %v714 = vpop.permute.xlu0 %713
          %v716 = vunpack.c.l.b16 %v711
          %v717 = vpack.c.b16 %v716, %v716
          %718 = vrot.lane.b32.xlu0 %v717, 120
          %v719 = vpop.permute.xlu0 %718
          %v721 = vsel %vm575, %v714, 0
          %v724 = vsel %vm575, %v719, 0
          %726 = vmatprep.subr.bf16.mxu0 0
          %727 = vmatpush1.bf16.xpose.msra.mxu0 %v724
          %728 = vmatprep.subr.bf16.mxu0 0
          %729 = vmatpush1.bf16.xpose.msra.mxu0 0
          %730 = vmatprep.subr.bf16.mxu0 0
          %731 = vmatpush1.bf16.xpose.msra.mxu0 0
          %732 = vmatprep.subr.bf16.mxu0 0
          %733 = vmatpush1.bf16.xpose.msra.mxu0 0
          %734 = vmatprep.subr.bf16.mxu0 0
          %735 = vmatpush1.bf16.xpose.msra.mxu0 0
          %736 = vmatprep.subr.bf16.mxu0 0
          %737 = vmatpush1.bf16.xpose.msra.mxu0 0
          %738 = vmatprep.subr.bf16.mxu0 0
          %739 = vmatpush1.bf16.xpose.msra.mxu0 0
          %740 = vmatprep.subr.bf16.mxu0 0
          %741 = vmatpush1.bf16.xpose.msra.mxu0 0
          %742 = vmatprep.subr.bf16.mxu0 0
          %743 = vmatpush1.bf16.xpose.msra.mxu0 0
          %744 = vmatprep.subr.bf16.mxu0 0
          %745 = vmatpush1.bf16.xpose.msra.mxu0 0
          %746 = vmatprep.subr.bf16.mxu0 0
          %747 = vmatpush1.bf16.xpose.msra.mxu0 0
          %748 = vmatprep.subr.bf16.mxu0 0
          %749 = vmatpush1.bf16.xpose.msra.mxu0 0
          %750 = vmatprep.subr.bf16.mxu0 0
          %751 = vmatpush1.bf16.xpose.msra.mxu0 0
          %752 = vmatprep.subr.bf16.mxu0 0
          %753 = vmatpush1.bf16.xpose.msra.mxu0 0
          %754 = vmatprep.subr.bf16.mxu0 0
          %755 = vmatpush1.bf16.xpose.msra.mxu0 0
          %756 = vmatprep.subr.bf16.mxu0 0
          %757 = vmatpush1.bf16.xpose.msra.mxu0 0
          %758 = vmatprep.mubr.bf16.mxu0 0
          %759 = vmatmul.mubr.bf16.gmra.mrb[0].mxu0 %v721
          %v760 = vpop.f32.mrb[0].mxu0
          %v761 = vadd.f32 0.0, %v760
          %v762 = vpop.f32.mrb[0].mxu0
          %v763 = vpop.f32.mrb[0].mxu0
          %v764 = vpop.f32.mrb[0].mxu0
          %765 = vdwg.mxu0
          %v766 = vsel %vm575, %v761, -inf
          %767 = vmax.xlane.f32.xlu0 %v766
          %v768 = vpop.xlane.xlu0 %767
          %v769 = vmax.f32 %v703, %v768
          %v770 = vsub.f32 %v703, %v769
          %v771 = vmul.f32 %v770, 1.442695
          %v772 = vpow.pop %v771
          %v773 = vsub.f32 %v761, %v769
          %v774 = vmul.f32 %v773, 1.442695
          %v775 = vpow.pop %v774
          %v776 = vmul.f32 %v772, %v704
          %v777 = vsel %vm575, %v775, 0.0
          %778 = vadd.xlane.f32.xlu0 %v777
          %v779 = vpop.xlane.xlu0 %778
          %v780 = vadd.f32 %v776, %v779
          %v781 = vmul.f32 %v772, %v705
          %v782 = vpack.c.bf16 %v775, %v775
          %783 = vrot.lane.b32.xlu0 %v717, 88
          %v784 = vpop.permute.xlu0 %783
          %v786 = vsel %vm575, %v782, 0
          %v789 = vsel %vm647, %v784, 0
          %791 = vmatprep.subr.bf16.mxu0 0
          %792 = vmatpush1.bf16.msra.mxu0 %v789
          %793 = vmatprep.subr.bf16.mxu0 0
          %794 = vmatpush1.bf16.msra.mxu0 0
          %795 = vmatprep.subr.bf16.mxu0 0
          %796 = vmatpush1.bf16.msra.mxu0 0
          %797 = vmatprep.subr.bf16.mxu0 0
          %798 = vmatpush1.bf16.msra.mxu0 0
          %799 = vmatprep.subr.bf16.mxu0 0
          %800 = vmatpush1.bf16.msra.mxu0 0
          %801 = vmatprep.subr.bf16.mxu0 0
          %802 = vmatpush1.bf16.msra.mxu0 0
          %803 = vmatprep.subr.bf16.mxu0 0
          %804 = vmatpush1.bf16.msra.mxu0 0
          %805 = vmatprep.subr.bf16.mxu0 0
          %806 = vmatpush1.bf16.msra.mxu0 0
          %807 = vmatprep.subr.bf16.mxu0 0
          %808 = vmatpush1.bf16.msra.mxu0 0
          %809 = vmatprep.subr.bf16.mxu0 0
          %810 = vmatpush1.bf16.msra.mxu0 0
          %811 = vmatprep.subr.bf16.mxu0 0
          %812 = vmatpush1.bf16.msra.mxu0 0
          %813 = vmatprep.subr.bf16.mxu0 0
          %814 = vmatpush1.bf16.msra.mxu0 0
          %815 = vmatprep.subr.bf16.mxu0 0
          %816 = vmatpush1.bf16.msra.mxu0 0
          %817 = vmatprep.subr.bf16.mxu0 0
          %818 = vmatpush1.bf16.msra.mxu0 0
          %819 = vmatprep.subr.bf16.mxu0 0
          %820 = vmatpush1.bf16.msra.mxu0 0
          %821 = vmatprep.subr.bf16.mxu0 0
          %822 = vmatpush1.bf16.msra.mxu0 0
          %823 = vmatprep.mubr.bf16.mxu0 0
          %824 = vmatmul.mubr.bf16.gmra.mrb[0].mxu0 %v786
          %v825 = vpop.f32.mrb[0].mxu0
          %v826 = vadd.f32 0.0, %v825
          %v827 = vpop.f32.mrb[0].mxu0
          %v828 = vpop.f32.mrb[0].mxu0
          %v829 = vpop.f32.mrb[0].mxu0
          %830 = vdwg.mxu0
          %v831 = vadd.f32 %v781, %v826
        $region72: #{tpu_custom_call.1} parent=39 // loop_footer
          %s700 = sadd.s32 %s698, 1
        $region73: #{tpu_custom_call.1} parent=39 // loop_footer_branch
          %697 = sbr.rel target = $region69
        $region74: #{tpu_custom_call.1} parent=39 // loop_exit
          _
        %v832 = vld [vmem:[%s573] sm:$0xf]
        %834 = vrot.lane.b32.xlu0 %v433, 120
        %v835 = vpop.permute.xlu0 %834
        %v837 = vunpack.c.l.b16 %v832
        %v838 = vpack.c.b16 %v837, %v837
        %839 = vrot.lane.b32.xlu0 %v838, 120
        %v840 = vpop.permute.xlu0 %839
        %v842 = vsel %vm575, %v835, 0
        %v845 = vsel %vm575, %v840, 0
        %847 = vmatprep.subr.bf16.mxu0 0
        %848 = vmatpush1.bf16.xpose.msra.mxu0 %v845
        %849 = vmatprep.subr.bf16.mxu0 0
        %850 = vmatpush1.bf16.xpose.msra.mxu0 0
        %851 = vmatprep.subr.bf16.mxu0 0
        %852 = vmatpush1.bf16.xpose.msra.mxu0 0
        %853 = vmatprep.subr.bf16.mxu0 0
        %854 = vmatpush1.bf16.xpose.msra.mxu0 0
        %855 = vmatprep.subr.bf16.mxu0 0
        %856 = vmatpush1.bf16.xpose.msra.mxu0 0
        %857 = vmatprep.subr.bf16.mxu0 0
        %858 = vmatpush1.bf16.xpose.msra.mxu0 0
        %859 = vmatprep.subr.bf16.mxu0 0
        %860 = vmatpush1.bf16.xpose.msra.mxu0 0
        %861 = vmatprep.subr.bf16.mxu0 0
        %862 = vmatpush1.bf16.xpose.msra.mxu0 0
        %863 = vmatprep.subr.bf16.mxu0 0
        %864 = vmatpush1.bf16.xpose.msra.mxu0 0
        %865 = vmatprep.subr.bf16.mxu0 0
        %866 = vmatpush1.bf16.xpose.msra.mxu0 0
        %867 = vmatprep.subr.bf16.mxu0 0
        %868 = vmatpush1.bf16.xpose.msra.mxu0 0
        %869 = vmatprep.subr.bf16.mxu0 0
        %870 = vmatpush1.bf16.xpose.msra.mxu0 0
        %871 = vmatprep.subr.bf16.mxu0 0
        %872 = vmatpush1.bf16.xpose.msra.mxu0 0
        %873 = vmatprep.subr.bf16.mxu0 0
        %874 = vmatpush1.bf16.xpose.msra.mxu0 0
        %875 = vmatprep.subr.bf16.mxu0 0
        %876 = vmatpush1.bf16.xpose.msra.mxu0 0
        %877 = vmatprep.subr.bf16.mxu0 0
        %878 = vmatpush1.bf16.xpose.msra.mxu0 0
        %879 = vmatprep.mubr.bf16.mxu0 0
        %880 = vmatmul.mubr.bf16.gmra.mrb[0].mxu0 %v842
        %v881 = vpop.f32.mrb[0].mxu0
        %v882 = vadd.f32 %v439, %v881
        %v883 = vpop.f32.mrb[0].mxu0
        %v884 = vpop.f32.mrb[0].mxu0
        %v885 = vpop.f32.mrb[0].mxu0
        %886 = vdwg.mxu0
        %v887 = vsel %vm575, %v882, -inf
        %888 = vmax.xlane.f32.xlu0 %v887
        %v889 = vpop.xlane.xlu0 %888
        %v890 = vmax.f32 %v703, %v889
        %v891 = vsub.f32 %v703, %v890
        %v892 = vmul.f32 %v891, 1.442695
        %v893 = vpow.pop %v892
        %v894 = vsub.f32 %v882, %v890
        %v895 = vmul.f32 %v894, 1.442695
        %v896 = vpow.pop %v895
        %v897 = vmul.f32 %v893, %v704
        %v898 = vsel %vm575, %v896, 0.0
        %899 = vadd.xlane.f32.xlu0 %v898
        %v900 = vpop.xlane.xlu0 %899
        %v901 = vadd.f32 %v897, %v900
        %v902 = vmul.f32 %v893, %v705
        %v903 = vpack.c.bf16 %v896, %v896
        %904 = vrot.lane.b32.xlu0 %v838, 88
        %v905 = vpop.permute.xlu0 %904
        %v907 = vsel %vm575, %v903, 0
        %v910 = vsel %vm647, %v905, 0
        %912 = vmatprep.subr.bf16.mxu0 0
        %913 = vmatpush1.bf16.msra.mxu0 %v910
        %914 = vmatprep.subr.bf16.mxu0 0
        %915 = vmatpush1.bf16.msra.mxu0 0
        %916 = vmatprep.subr.bf16.mxu0 0
        %917 = vmatpush1.bf16.msra.mxu0 0
        %918 = vmatprep.subr.bf16.mxu0 0
        %919 = vmatpush1.bf16.msra.mxu0 0
        %920 = vmatprep.subr.bf16.mxu0 0
        %921 = vmatpush1.bf16.msra.mxu0 0
        %922 = vmatprep.subr.bf16.mxu0 0
        %923 = vmatpush1.bf16.msra.mxu0 0
        %924 = vmatprep.subr.bf16.mxu0 0
        %925 = vmatpush1.bf16.msra.mxu0 0
        %926 = vmatprep.subr.bf16.mxu0 0
        %927 = vmatpush1.bf16.msra.mxu0 0
        %928 = vmatprep.subr.bf16.mxu0 0
        %929 = vmatpush1.bf16.msra.mxu0 0
        %930 = vmatprep.subr.bf16.mxu0 0
        %931 = vmatpush1.bf16.msra.mxu0 0
        %932 = vmatprep.subr.bf16.mxu0 0
        %933 = vmatpush1.bf16.msra.mxu0 0
        %934 = vmatprep.subr.bf16.mxu0 0
        %935 = vmatpush1.bf16.msra.mxu0 0
        %936 = vmatprep.subr.bf16.mxu0 0
        %937 = vmatpush1.bf16.msra.mxu0 0
        %938 = vmatprep.subr.bf16.mxu0 0
        %939 = vmatpush1.bf16.msra.mxu0 0
        %940 = vmatprep.subr.bf16.mxu0 0
        %941 = vmatpush1.bf16.msra.mxu0 0
        %942 = vmatprep.subr.bf16.mxu0 0
        %943 = vmatpush1.bf16.msra.mxu0 0
        %944 = vmatprep.mubr.bf16.mxu0 0
        %945 = vmatmul.mubr.bf16.gmra.mrb[0].mxu0 %v907
        %v946 = vpop.f32.mrb[0].mxu0
        %v947 = vadd.f32 0.0, %v946
        %v948 = vpop.f32.mrb[0].mxu0
        %v949 = vpop.f32.mrb[0].mxu0
        %v950 = vpop.f32.mrb[0].mxu0
        %951 = vdwg.mxu0
        %v952 = vadd.f32 %v902, %v947
        %v953 = vrcp.pop %v901
        %v954 = vmul.f32 %v952, %v953
        %v955 = vpack.c.bf16 %v954, %v954
        %v957 = vunpack.c.l.b16 %v955
        %v958 = vpack.c.b16 %v957, %v957
        %959 = vrot.lane.b32.xlu0 %v958, 8
        %v960 = vpop.permute.xlu0 %959
        %vm962 = vcmask 126016
        %963 = vst.msk [vmem:[#allocation3] sm:$0xf] %vm962, %v960
        // While loop
        $region75: #{tpu_custom_call.1} parent=39 // loop_pre_header
          _
        $region76: #{tpu_custom_call.1} parent=39 // loop_header
          %s965 = sphi 0, %s967
          %p966 = scmp.ge.s32.totalorder %s965, %s29
          %v970 = vphi -1e+30, %v1035
          %v971 = vphi 0.0, %v1046
          %v972 = vphi 0.0, %v1097
        $region77: #{tpu_custom_call.1} parent=39 // loop_header_branch
          %969 = sbr.rel (%p966) target = $region81
        $region78: #{tpu_custom_call.1} parent=39 // loop_body
          %s973 = smul.u32 %s965, 8
          %s974 = sshra.s32 %s973, 3
          %s975 = sand.u32 %s973, 7
          %s976 = smul.addr %s974, 4
          %s977 = scalar_lea.vmem [#allocation2], %s976
          %v978 = vld [vmem:[%s977] sm:$0xf]
          %979 = vrot.lane.b32.xlu0 %v433, 112
          %v980 = vpop.permute.xlu0 %979
          %v982 = vunpack.c.l.b16 %v978
          %v983 = vpack.c.b16 %v982, %v982
          %984 = vrot.lane.b32.xlu0 %v983, 112
          %v985 = vpop.permute.xlu0 %984
          %v987 = vsel %vm575, %v980, 0
          %v990 = vsel %vm575, %v985, 0
          %992 = vmatprep.subr.bf16.mxu0 0
          %993 = vmatpush1.bf16.xpose.msra.mxu0 %v990
          %994 = vmatprep.subr.bf16.mxu0 0
          %995 = vmatpush1.bf16.xpose.msra.mxu0 0
          %996 = vmatprep.subr.bf16.mxu0 0
          %997 = vmatpush1.bf16.xpose.msra.mxu0 0
          %998 = vmatprep.subr.bf16.mxu0 0
          %999 = vmatpush1.bf16.xpose.msra.mxu0 0
          %1000 = vmatprep.subr.bf16.mxu0 0
          %1001 = vmatpush1.bf16.xpose.msra.mxu0 0
          %1002 = vmatprep.subr.bf16.mxu0 0
          %1003 = vmatpush1.bf16.xpose.msra.mxu0 0
          %1004 = vmatprep.subr.bf16.mxu0 0
          %1005 = vmatpush1.bf16.xpose.msra.mxu0 0
          %1006 = vmatprep.subr.bf16.mxu0 0
          %1007 = vmatpush1.bf16.xpose.msra.mxu0 0
          %1008 = vmatprep.subr.bf16.mxu0 0
          %1009 = vmatpush1.bf16.xpose.msra.mxu0 0
          %1010 = vmatprep.subr.bf16.mxu0 0
          %1011 = vmatpush1.bf16.xpose.msra.mxu0 0
          %1012 = vmatprep.subr.bf16.mxu0 0
          %1013 = vmatpush1.bf16.xpose.msra.mxu0 0
          %1014 = vmatprep.subr.bf16.mxu0 0
          %1015 = vmatpush1.bf16.xpose.msra.mxu0 0
          %1016 = vmatprep.subr.bf16.mxu0 0
          %1017 = vmatpush1.bf16.xpose.msra.mxu0 0
          %1018 = vmatprep.subr.bf16.mxu0 0
          %1019 = vmatpush1.bf16.xpose.msra.mxu0 0
          %1020 = vmatprep.subr.bf16.mxu0 0
          %1021 = vmatpush1.bf16.xpose.msra.mxu0 0
          %1022 = vmatprep.subr.bf16.mxu0 0
          %1023 = vmatpush1.bf16.xpose.msra.mxu0 0
          %1024 = vmatprep.mubr.bf16.mxu0 0
          %1025 = vmatmul.mubr.bf16.gmra.mrb[0].mxu0 %v987
          %v1026 = vpop.f32.mrb[0].mxu0
          %v1027 = vadd.f32 0.0, %v1026
          %v1028 = vpop.f32.mrb[0].mxu0
          %v1029 = vpop.f32.mrb[0].mxu0
          %v1030 = vpop.f32.mrb[0].mxu0
          %1031 = vdwg.mxu0
          %v1032 = vsel %vm575, %v1027, -inf
          %1033 = vmax.xlane.f32.xlu0 %v1032
          %v1034 = vpop.xlane.xlu0 %1033
          %v1035 = vmax.f32 %v970, %v1034
          %v1036 = vsub.f32 %v970, %v1035
          %v1037 = vmul.f32 %v1036, 1.442695
          %v1038 = vpow.pop %v1037
          %v1039 = vsub.f32 %v1027, %v1035
          %v1040 = vmul.f32 %v1039, 1.442695
          %v1041 = vpow.pop %v1040
          %v1042 = vmul.f32 %v1038, %v971
          %v1043 = vsel %vm575, %v1041, 0.0
          %1044 = vadd.xlane.f32.xlu0 %v1043
          %v1045 = vpop.xlane.xlu0 %1044
          %v1046 = vadd.f32 %v1042, %v1045
          %v1047 = vmul.f32 %v1038, %v972
          %v1048 = vpack.c.bf16 %v1041, %v1041
          %1049 = vrot.lane.b32.xlu0 %v983, 80
          %v1050 = vpop.permute.xlu0 %1049
          %v1052 = vsel %vm575, %v1048, 0
          %v1055 = vsel %vm647, %v1050, 0
          %1057 = vmatprep.subr.bf16.mxu0 0
          %1058 = vmatpush1.bf16.msra.mxu0 %v1055
          %1059 = vmatprep.subr.bf16.mxu0 0
          %1060 = vmatpush1.bf16.msra.mxu0 0
          %1061 = vmatprep.subr.bf16.mxu0 0
          %1062 = vmatpush1.bf16.msra.mxu0 0
          %1063 = vmatprep.subr.bf16.mxu0 0
          %1064 = vmatpush1.bf16.msra.mxu0 0
          %1065 = vmatprep.subr.bf16.mxu0 0
          %1066 = vmatpush1.bf16.msra.mxu0 0
          %1067 = vmatprep.subr.bf16.mxu0 0
          %1068 = vmatpush1.bf16.msra.mxu0 0
          %1069 = vmatprep.subr.bf16.mxu0 0
          %1070 = vmatpush1.bf16.msra.mxu0 0
          %1071 = vmatprep.subr.bf16.mxu0 0
          %1072 = vmatpush1.bf16.msra.mxu0 0
          %1073 = vmatprep.subr.bf16.mxu0 0
          %1074 = vmatpush1.bf16.msra.mxu0 0
          %1075 = vmatprep.subr.bf16.mxu0 0
          %1076 = vmatpush1.bf16.msra.mxu0 0
          %1077 = vmatprep.subr.bf16.mxu0 0
          %1078 = vmatpush1.bf16.msra.mxu0 0
          %1079 = vmatprep.subr.bf16.mxu0 0
          %1080 = vmatpush1.bf16.msra.mxu0 0
          %1081 = vmatprep.subr.bf16.mxu0 0
          %1082 = vmatpush1.bf16.msra.mxu0 0
          %1083 = vmatprep.subr.bf16.mxu0 0
          %1084 = vmatpush1.bf16.msra.mxu0 0
          %1085 = vmatprep.subr.bf16.mxu0 0
          %1086 = vmatpush1.bf16.msra.mxu0 0
          %1087 = vmatprep.subr.bf16.mxu0 0
          %1088 = vmatpush1.bf16.msra.mxu0 0
          %1089 = vmatprep.mubr.bf16.mxu0 0
          %1090 = vmatmul.mubr.bf16.gmra.mrb[0].mxu0 %v1052
          %v1091 = vpop.f32.mrb[0].mxu0
          %v1092 = vadd.f32 0.0, %v1091
          %v1093 = vpop.f32.mrb[0].mxu0
          %v1094 = vpop.f32.mrb[0].mxu0
          %v1095 = vpop.f32.mrb[0].mxu0
          %1096 = vdwg.mxu0
          %v1097 = vadd.f32 %v1047, %v1092
        $region79: #{tpu_custom_call.1} parent=39 // loop_footer
          %s967 = sadd.s32 %s965, 1
        $region80: #{tpu_custom_call.1} parent=39 // loop_footer_branch
          %964 = sbr.rel target = $region76
        $region81: #{tpu_custom_call.1} parent=39 // loop_exit
          _
        %v1098 = vld [vmem:[%s573] sm:$0xf]
        %1099 = vrot.lane.b32.xlu0 %v433, 112
        %v1100 = vpop.permute.xlu0 %1099
        %v1102 = vunpack.c.l.b16 %v1098
        %v1103 = vpack.c.b16 %v1102, %v1102
        %1104 = vrot.lane.b32.xlu0 %v1103, 112
        %v1105 = vpop.permute.xlu0 %1104
        %v1107 = vsel %vm575, %v1100, 0
        %v1110 = vsel %vm575, %v1105, 0
        %1112 = vmatprep.subr.bf16.mxu0 0
        %1113 = vmatpush1.bf16.xpose.msra.mxu0 %v1110
        %1114 = vmatprep.subr.bf16.mxu0 0
        %1115 = vmatpush1.bf16.xpose.msra.mxu0 0
        %1116 = vmatprep.subr.bf16.mxu0 0
        %1117 = vmatpush1.bf16.xpose.msra.mxu0 0
        %1118 = vmatprep.subr.bf16.mxu0 0
        %1119 = vmatpush1.bf16.xpose.msra.mxu0 0
        %1120 = vmatprep.subr.bf16.mxu0 0
        %1121 = vmatpush1.bf16.xpose.msra.mxu0 0
        %1122 = vmatprep.subr.bf16.mxu0 0
        %1123 = vmatpush1.bf16.xpose.msra.mxu0 0
        %1124 = vmatprep.subr.bf16.mxu0 0
        %1125 = vmatpush1.bf16.xpose.msra.mxu0 0
        %1126 = vmatprep.subr.bf16.mxu0 0
        %1127 = vmatpush1.bf16.xpose.msra.mxu0 0
        %1128 = vmatprep.subr.bf16.mxu0 0
        %1129 = vmatpush1.bf16.xpose.msra.mxu0 0
        %1130 = vmatprep.subr.bf16.mxu0 0
        %1131 = vmatpush1.bf16.xpose.msra.mxu0 0
        %1132 = vmatprep.subr.bf16.mxu0 0
        %1133 = vmatpush1.bf16.xpose.msra.mxu0 0
        %1134 = vmatprep.subr.bf16.mxu0 0
        %1135 = vmatpush1.bf16.xpose.msra.mxu0 0
        %1136 = vmatprep.subr.bf16.mxu0 0
        %1137 = vmatpush1.bf16.xpose.msra.mxu0 0
        %1138 = vmatprep.subr.bf16.mxu0 0
        %1139 = vmatpush1.bf16.xpose.msra.mxu0 0
        %1140 = vmatprep.subr.bf16.mxu0 0
        %1141 = vmatpush1.bf16.xpose.msra.mxu0 0
        %1142 = vmatprep.subr.bf16.mxu0 0
        %1143 = vmatpush1.bf16.xpose.msra.mxu0 0
        %1144 = vmatprep.mubr.bf16.mxu0 0
        %1145 = vmatmul.mubr.bf16.gmra.mrb[0].mxu0 %v1107
        %v1146 = vpop.f32.mrb[0].mxu0
        %v1147 = vadd.f32 %v439, %v1146
        %v1148 = vpop.f32.mrb[0].mxu0
        %v1149 = vpop.f32.mrb[0].mxu0
        %v1150 = vpop.f32.mrb[0].mxu0
        %1151 = vdwg.mxu0
        %v1152 = vsel %vm575, %v1147, -inf
        %1153 = vmax.xlane.f32.xlu0 %v1152
        %v1154 = vpop.xlane.xlu0 %1153
        %v1155 = vmax.f32 %v970, %v1154
        %v1156 = vsub.f32 %v970, %v1155
        %v1157 = vmul.f32 %v1156, 1.442695
        %v1158 = vpow.pop %v1157
        %v1159 = vsub.f32 %v1147, %v1155
        %v1160 = vmul.f32 %v1159, 1.442695
        %v1161 = vpow.pop %v1160
        %v1162 = vmul.f32 %v1158, %v971
        %v1163 = vsel %vm575, %v1161, 0.0
        %1164 = vadd.xlane.f32.xlu0 %v1163
        %v1165 = vpop.xlane.xlu0 %1164
        %v1166 = vadd.f32 %v1162, %v1165
        %v1167 = vmul.f32 %v1158, %v972
        %v1168 = vpack.c.bf16 %v1161, %v1161
        %1169 = vrot.lane.b32.xlu0 %v1103, 80
        %v1170 = vpop.permute.xlu0 %1169
        %v1172 = vsel %vm575, %v1168, 0
        %v1175 = vsel %vm647, %v1170, 0
        %1177 = vmatprep.subr.bf16.mxu0 0
        %1178 = vmatpush1.bf16.msra.mxu0 %v1175
        %1179 = vmatprep.subr.bf16.mxu0 0
        %1180 = vmatpush1.bf16.msra.mxu0 0
        %1181 = vmatprep.subr.bf16.mxu0 0
        %1182 = vmatpush1.bf16.msra.mxu0 0
        %1183 = vmatprep.subr.bf16.mxu0 0
        %1184 = vmatpush1.bf16.msra.mxu0 0
        %1185 = vmatprep.subr.bf16.mxu0 0
        %1186 = vmatpush1.bf16.msra.mxu0 0
        %1187 = vmatprep.subr.bf16.mxu0 0
        %1188 = vmatpush1.bf16.msra.mxu0 0
        %1189 = vmatprep.subr.bf16.mxu0 0
        %1190 = vmatpush1.bf16.msra.mxu0 0
        %1191 = vmatprep.subr.bf16.mxu0 0
        %1192 = vmatpush1.bf16.msra.mxu0 0
        %1193 = vmatprep.subr.bf16.mxu0 0
        %1194 = vmatpush1.bf16.msra.mxu0 0
        %1195 = vmatprep.subr.bf16.mxu0 0
        %1196 = vmatpush1.bf16.msra.mxu0 0
        %1197 = vmatprep.subr.bf16.mxu0 0
        %1198 = vmatpush1.bf16.msra.mxu0 0
        %1199 = vmatprep.subr.bf16.mxu0 0
        %1200 = vmatpush1.bf16.msra.mxu0 0
        %1201 = vmatprep.subr.bf16.mxu0 0
        %1202 = vmatpush1.bf16.msra.mxu0 0
        %1203 = vmatprep.subr.bf16.mxu0 0
        %1204 = vmatpush1.bf16.msra.mxu0 0
        %1205 = vmatprep.subr.bf16.mxu0 0
        %1206 = vmatpush1.bf16.msra.mxu0 0
        %1207 = vmatprep.subr.bf16.mxu0 0
        %1208 = vmatpush1.bf16.msra.mxu0 0
        %1209 = vmatprep.mubr.bf16.mxu0 0
        %1210 = vmatmul.mubr.bf16.gmra.mrb[0].mxu0 %v1172
        %v1211 = vpop.f32.mrb[0].mxu0
        %v1212 = vadd.f32 0.0, %v1211
        %v1213 = vpop.f32.mrb[0].mxu0
        %v1214 = vpop.f32.mrb[0].mxu0
        %v1215 = vpop.f32.mrb[0].mxu0
        %1216 = vdwg.mxu0
        %v1217 = vadd.f32 %v1167, %v1212
        %v1218 = vrcp.pop %v1166
        %v1219 = vmul.f32 %v1217, %v1218
        %v1220 = vpack.c.bf16 %v1219, %v1219
        %v1222 = vunpack.c.l.b16 %v1220
        %v1223 = vpack.c.b16 %v1222, %v1222
        %1224 = vrot.lane.b32.xlu0 %v1223, 16
        %v1225 = vpop.permute.xlu0 %1224
        %vm1227 = vcmask 191616
        %1228 = vst.msk [vmem:[#allocation3] sm:$0xf] %vm1227, %v1225
        // While loop
        $region82: #{tpu_custom_call.1} parent=39 // loop_pre_header
          _
        $region83: #{tpu_custom_call.1} parent=39 // loop_header
          %s1230 = sphi 0, %s1232
          %p1231 = scmp.ge.s32.totalorder %s1230, %s29
          %v1235 = vphi -1e+30, %v1300
          %v1236 = vphi 0.0, %v1311
          %v1237 = vphi 0.0, %v1362
        $region84: #{tpu_custom_call.1} parent=39 // loop_header_branch
          %1234 = sbr.rel (%p1231) target = $region88
        $region85: #{tpu_custom_call.1} parent=39 // loop_body
          %s1238 = smul.u32 %s1230, 8
          %s1239 = sshra.s32 %s1238, 3
          %s1240 = sand.u32 %s1238, 7
          %s1241 = smul.addr %s1239, 4
          %s1242 = scalar_lea.vmem [#allocation2], %s1241
          %v1243 = vld [vmem:[%s1242] sm:$0xf]
          %1244 = vrot.lane.b32.xlu0 %v433, 104
          %v1245 = vpop.permute.xlu0 %1244
          %v1247 = vunpack.c.l.b16 %v1243
          %v1248 = vpack.c.b16 %v1247, %v1247
          %1249 = vrot.lane.b32.xlu0 %v1248, 104
          %v1250 = vpop.permute.xlu0 %1249
          %v1252 = vsel %vm575, %v1245, 0
          %v1255 = vsel %vm575, %v1250, 0
          %1257 = vmatprep.subr.bf16.mxu0 0
          %1258 = vmatpush1.bf16.xpose.msra.mxu0 %v1255
          %1259 = vmatprep.subr.bf16.mxu0 0
          %1260 = vmatpush1.bf16.xpose.msra.mxu0 0
          %1261 = vmatprep.subr.bf16.mxu0 0
          %1262 = vmatpush1.bf16.xpose.msra.mxu0 0
          %1263 = vmatprep.subr.bf16.mxu0 0
          %1264 = vmatpush1.bf16.xpose.msra.mxu0 0
          %1265 = vmatprep.subr.bf16.mxu0 0
          %1266 = vmatpush1.bf16.xpose.msra.mxu0 0
          %1267 = vmatprep.subr.bf16.mxu0 0
          %1268 = vmatpush1.bf16.xpose.msra.mxu0 0
          %1269 = vmatprep.subr.bf16.mxu0 0
          %1270 = vmatpush1.bf16.xpose.msra.mxu0 0
          %1271 = vmatprep.subr.bf16.mxu0 0
          %1272 = vmatpush1.bf16.xpose.msra.mxu0 0
          %1273 = vmatprep.subr.bf16.mxu0 0
          %1274 = vmatpush1.bf16.xpose.msra.mxu0 0
          %1275 = vmatprep.subr.bf16.mxu0 0
          %1276 = vmatpush1.bf16.xpose.msra.mxu0 0
          %1277 = vmatprep.subr.bf16.mxu0 0
          %1278 = vmatpush1.bf16.xpose.msra.mxu0 0
          %1279 = vmatprep.subr.bf16.mxu0 0
          %1280 = vmatpush1.bf16.xpose.msra.mxu0 0
          %1281 = vmatprep.subr.bf16.mxu0 0
          %1282 = vmatpush1.bf16.xpose.msra.mxu0 0
          %1283 = vmatprep.subr.bf16.mxu0 0
          %1284 = vmatpush1.bf16.xpose.msra.mxu0 0
          %1285 = vmatprep.subr.bf16.mxu0 0
          %1286 = vmatpush1.bf16.xpose.msra.mxu0 0
          %1287 = vmatprep.subr.bf16.mxu0 0
          %1288 = vmatpush1.bf16.xpose.msra.mxu0 0
          %1289 = vmatprep.mubr.bf16.mxu0 0
          %1290 = vmatmul.mubr.bf16.gmra.mrb[0].mxu0 %v1252
          %v1291 = vpop.f32.mrb[0].mxu0
          %v1292 = vadd.f32 0.0, %v1291
          %v1293 = vpop.f32.mrb[0].mxu0
          %v1294 = vpop.f32.mrb[0].mxu0
          %v1295 = vpop.f32.mrb[0].mxu0
          %1296 = vdwg.mxu0
          %v1297 = vsel %vm575, %v1292, -inf
          %1298 = vmax.xlane.f32.xlu0 %v1297
          %v1299 = vpop.xlane.xlu0 %1298
          %v1300 = vmax.f32 %v1235, %v1299
          %v1301 = vsub.f32 %v1235, %v1300
          %v1302 = vmul.f32 %v1301, 1.442695
          %v1303 = vpow.pop %v1302
          %v1304 = vsub.f32 %v1292, %v1300
          %v1305 = vmul.f32 %v1304, 1.442695
          %v1306 = vpow.pop %v1305
          %v1307 = vmul.f32 %v1303, %v1236
          %v1308 = vsel %vm575, %v1306, 0.0
          %1309 = vadd.xlane.f32.xlu0 %v1308
          %v1310 = vpop.xlane.xlu0 %1309
          %v1311 = vadd.f32 %v1307, %v1310
          %v1312 = vmul.f32 %v1303, %v1237
          %v1313 = vpack.c.bf16 %v1306, %v1306
          %1314 = vrot.lane.b32.xlu0 %v1248, 72
          %v1315 = vpop.permute.xlu0 %1314
          %v1317 = vsel %vm575, %v1313, 0
          %v1320 = vsel %vm647, %v1315, 0
          %1322 = vmatprep.subr.bf16.mxu0 0
          %1323 = vmatpush1.bf16.msra.mxu0 %v1320
          %1324 = vmatprep.subr.bf16.mxu0 0
          %1325 = vmatpush1.bf16.msra.mxu0 0
          %1326 = vmatprep.subr.bf16.mxu0 0
          %1327 = vmatpush1.bf16.msra.mxu0 0
          %1328 = vmatprep.subr.bf16.mxu0 0
          %1329 = vmatpush1.bf16.msra.mxu0 0
          %1330 = vmatprep.subr.bf16.mxu0 0
          %1331 = vmatpush1.bf16.msra.mxu0 0
          %1332 = vmatprep.subr.bf16.mxu0 0
          %1333 = vmatpush1.bf16.msra.mxu0 0
          %1334 = vmatprep.subr.bf16.mxu0 0
          %1335 = vmatpush1.bf16.msra.mxu0 0
          %1336 = vmatprep.subr.bf16.mxu0 0
          %1337 = vmatpush1.bf16.msra.mxu0 0
          %1338 = vmatprep.subr.bf16.mxu0 0
          %1339 = vmatpush1.bf16.msra.mxu0 0
          %1340 = vmatprep.subr.bf16.mxu0 0
          %1341 = vmatpush1.bf16.msra.mxu0 0
          %1342 = vmatprep.subr.bf16.mxu0 0
          %1343 = vmatpush1.bf16.msra.mxu0 0
          %1344 = vmatprep.subr.bf16.mxu0 0
          %1345 = vmatpush1.bf16.msra.mxu0 0
          %1346 = vmatprep.subr.bf16.mxu0 0
          %1347 = vmatpush1.bf16.msra.mxu0 0
          %1348 = vmatprep.subr.bf16.mxu0 0
          %1349 = vmatpush1.bf16.msra.mxu0 0
          %1350 = vmatprep.subr.bf16.mxu0 0
          %1351 = vmatpush1.bf16.msra.mxu0 0
          %1352 = vmatprep.subr.bf16.mxu0 0
          %1353 = vmatpush1.bf16.msra.mxu0 0
          %1354 = vmatprep.mubr.bf16.mxu0 0
          %1355 = vmatmul.mubr.bf16.gmra.mrb[0].mxu0 %v1317
          %v1356 = vpop.f32.mrb[0].mxu0
          %v1357 = vadd.f32 0.0, %v1356
          %v1358 = vpop.f32.mrb[0].mxu0
          %v1359 = vpop.f32.mrb[0].mxu0
          %v1360 = vpop.f32.mrb[0].mxu0
          %1361 = vdwg.mxu0
          %v1362 = vadd.f32 %v1312, %v1357
        $region86: #{tpu_custom_call.1} parent=39 // loop_footer
          %s1232 = sadd.s32 %s1230, 1
        $region87: #{tpu_custom_call.1} parent=39 // loop_footer_branch
          %1229 = sbr.rel target = $region83
        $region88: #{tpu_custom_call.1} parent=39 // loop_exit
          _
        %v1363 = vld [vmem:[%s573] sm:$0xf]
        %1364 = vrot.lane.b32.xlu0 %v433, 104
        %v1365 = vpop.permute.xlu0 %1364
        %v1367 = vunpack.c.l.b16 %v1363
        %v1368 = vpack.c.b16 %v1367, %v1367
        %1369 = vrot.lane.b32.xlu0 %v1368, 104
        %v1370 = vpop.permute.xlu0 %1369
        %v1372 = vsel %vm575, %v1365, 0
        %v1375 = vsel %vm575, %v1370, 0
        %1377 = vmatprep.subr.bf16.mxu0 0
        %1378 = vmatpush1.bf16.xpose.msra.mxu0 %v1375
        %1379 = vmatprep.subr.bf16.mxu0 0
        %1380 = vmatpush1.bf16.xpose.msra.mxu0 0
        %1381 = vmatprep.subr.bf16.mxu0 0
        %1382 = vmatpush1.bf16.xpose.msra.mxu0 0
        %1383 = vmatprep.subr.bf16.mxu0 0
        %1384 = vmatpush1.bf16.xpose.msra.mxu0 0
        %1385 = vmatprep.subr.bf16.mxu0 0
        %1386 = vmatpush1.bf16.xpose.msra.mxu0 0
        %1387 = vmatprep.subr.bf16.mxu0 0
        %1388 = vmatpush1.bf16.xpose.msra.mxu0 0
        %1389 = vmatprep.subr.bf16.mxu0 0
        %1390 = vmatpush1.bf16.xpose.msra.mxu0 0
        %1391 = vmatprep.subr.bf16.mxu0 0
        %1392 = vmatpush1.bf16.xpose.msra.mxu0 0
        %1393 = vmatprep.subr.bf16.mxu0 0
        %1394 = vmatpush1.bf16.xpose.msra.mxu0 0
        %1395 = vmatprep.subr.bf16.mxu0 0
        %1396 = vmatpush1.bf16.xpose.msra.mxu0 0
        %1397 = vmatprep.subr.bf16.mxu0 0
        %1398 = vmatpush1.bf16.xpose.msra.mxu0 0
        %1399 = vmatprep.subr.bf16.mxu0 0
        %1400 = vmatpush1.bf16.xpose.msra.mxu0 0
        %1401 = vmatprep.subr.bf16.mxu0 0
        %1402 = vmatpush1.bf16.xpose.msra.mxu0 0
        %1403 = vmatprep.subr.bf16.mxu0 0
        %1404 = vmatpush1.bf16.xpose.msra.mxu0 0
        %1405 = vmatprep.subr.bf16.mxu0 0
        %1406 = vmatpush1.bf16.xpose.msra.mxu0 0
        %1407 = vmatprep.subr.bf16.mxu0 0
        %1408 = vmatpush1.bf16.xpose.msra.mxu0 0
        %1409 = vmatprep.mubr.bf16.mxu0 0
        %1410 = vmatmul.mubr.bf16.gmra.mrb[0].mxu0 %v1372
        %v1411 = vpop.f32.mrb[0].mxu0
        %v1412 = vadd.f32 %v439, %v1411
        %v1413 = vpop.f32.mrb[0].mxu0
        %v1414 = vpop.f32.mrb[0].mxu0
        %v1415 = vpop.f32.mrb[0].mxu0
        %1416 = vdwg.mxu0
        %v1417 = vsel %vm575, %v1412, -inf
        %1418 = vmax.xlane.f32.xlu0 %v1417
        %v1419 = vpop.xlane.xlu0 %1418
        %v1420 = vmax.f32 %v1235, %v1419
        %v1421 = vsub.f32 %v1235, %v1420
        %v1422 = vmul.f32 %v1421, 1.442695
        %v1423 = vpow.pop %v1422
        %v1424 = vsub.f32 %v1412, %v1420
        %v1425 = vmul.f32 %v1424, 1.442695
        %v1426 = vpow.pop %v1425
        %v1427 = vmul.f32 %v1423, %v1236
        %v1428 = vsel %vm575, %v1426, 0.0
        %1429 = vadd.xlane.f32.xlu0 %v1428
        %v1430 = vpop.xlane.xlu0 %1429
        %v1431 = vadd.f32 %v1427, %v1430
        %v1432 = vmul.f32 %v1423, %v1237
        %v1433 = vpack.c.bf16 %v1426, %v1426
        %1434 = vrot.lane.b32.xlu0 %v1368, 72
        %v1435 = vpop.permute.xlu0 %1434
        %v1437 = vsel %vm575, %v1433, 0
        %v1440 = vsel %vm647, %v1435, 0
        %1442 = vmatprep.subr.bf16.mxu0 0
        %1443 = vmatpush1.bf16.msra.mxu0 %v1440
        %1444 = vmatprep.subr.bf16.mxu0 0
        %1445 = vmatpush1.bf16.msra.mxu0 0
        %1446 = vmatprep.subr.bf16.mxu0 0
        %1447 = vmatpush1.bf16.msra.mxu0 0
        %1448 = vmatprep.subr.bf16.mxu0 0
        %1449 = vmatpush1.bf16.msra.mxu0 0
        %1450 = vmatprep.subr.bf16.mxu0 0
        %1451 = vmatpush1.bf16.msra.mxu0 0
        %1452 = vmatprep.subr.bf16.mxu0 0
        %1453 = vmatpush1.bf16.msra.mxu0 0
        %1454 = vmatprep.subr.bf16.mxu0 0
        %1455 = vmatpush1.bf16.msra.mxu0 0
        %1456 = vmatprep.subr.bf16.mxu0 0
        %1457 = vmatpush1.bf16.msra.mxu0 0
        %1458 = vmatprep.subr.bf16.mxu0 0
        %1459 = vmatpush1.bf16.msra.mxu0 0
        %1460 = vmatprep.subr.bf16.mxu0 0
        %1461 = vmatpush1.bf16.msra.mxu0 0
        %1462 = vmatprep.subr.bf16.mxu0 0
        %1463 = vmatpush1.bf16.msra.mxu0 0
        %1464 = vmatprep.subr.bf16.mxu0 0
        %1465 = vmatpush1.bf16.msra.mxu0 0
        %1466 = vmatprep.subr.bf16.mxu0 0
        %1467 = vmatpush1.bf16.msra.mxu0 0
        %1468 = vmatprep.subr.bf16.mxu0 0
        %1469 = vmatpush1.bf16.msra.mxu0 0
        %1470 = vmatprep.subr.bf16.mxu0 0
        %1471 = vmatpush1.bf16.msra.mxu0 0
        %1472 = vmatprep.subr.bf16.mxu0 0
        %1473 = vmatpush1.bf16.msra.mxu0 0
        %1474 = vmatprep.mubr.bf16.mxu0 0
        %1475 = vmatmul.mubr.bf16.gmra.mrb[0].mxu0 %v1437
        %v1476 = vpop.f32.mrb[0].mxu0
        %v1477 = vadd.f32 0.0, %v1476
        %v1478 = vpop.f32.mrb[0].mxu0
        %v1479 = vpop.f32.mrb[0].mxu0
        %v1480 = vpop.f32.mrb[0].mxu0
        %1481 = vdwg.mxu0
        %v1482 = vadd.f32 %v1432, %v1477
        %v1483 = vrcp.pop %v1431
        %v1484 = vmul.f32 %v1482, %v1483
        %v1485 = vpack.c.bf16 %v1484, %v1484
        %v1487 = vunpack.c.l.b16 %v1485
        %v1488 = vpack.c.b16 %v1487, %v1487
        %1489 = vrot.lane.b32.xlu0 %v1488, 24
        %v1490 = vpop.permute.xlu0 %1489
        %vm1492 = vcmask 257216
        %1493 = vst.msk [vmem:[#allocation3] sm:$0xf] %vm1492, %v1490
        %v1494 = vld [vmem:[#allocation3] sm:$0xf]
        %v1495 = vld [vmem:[#allocation10] sm:$0xf]
        %v1496 = vld [vmem:[#allocation10 + $0x4] sm:$0xf]
        %v1497 = vld [vmem:[#allocation10 + $0x8] sm:$0xf]
        %v1498 = vld [vmem:[#allocation10 + $0xc] sm:$0xf]
        %v1499 = vld [vmem:[%s4] sm:$0x1]
        %v1501 = vlaneseq
        %v1502 = vshrl.u32 %v1501, 7
        %v1503 = vsub.s32 0, %v1502
        %v1504 = vrot.slane %v1499, %v1503
        %v1510 = vunpack.c.l.b16 %v1495
        %v1511 = vunpack.c.l.b16 %v1496
        %v1512 = vunpack.c.l.b16 %v1497
        %v1513 = vunpack.c.l.b16 %v1498
        %v1514 = vpack.c.b16 %v1511, %v1510
        %v1515 = vpack.c.b16 %v1513, %v1512
        %v1519 = vsel %vm389, %v1494, 0
        %1521 = vmatprep.subr.bf16.mxu0 0
        %1522 = vmatpush1.bf16.msra.mxu0 %v1514
        %1523 = vmatprep.subr.bf16.mxu0 0
        %1524 = vmatpush1.bf16.msra.mxu0 %v1515
        %1525 = vmatprep.subr.bf16.mxu0 0
        %1526 = vmatpush1.bf16.msra.mxu0 0
        %1527 = vmatprep.subr.bf16.mxu0 0
        %1528 = vmatpush1.bf16.msra.mxu0 0
        %1529 = vmatprep.subr.bf16.mxu0 0
        %1530 = vmatpush1.bf16.msra.mxu0 0
        %1531 = vmatprep.subr.bf16.mxu0 0
        %1532 = vmatpush1.bf16.msra.mxu0 0
        %1533 = vmatprep.subr.bf16.mxu0 0
        %1534 = vmatpush1.bf16.msra.mxu0 0
        %1535 = vmatprep.subr.bf16.mxu0 0
        %1536 = vmatpush1.bf16.msra.mxu0 0
        %1537 = vmatprep.subr.bf16.mxu0 0
        %1538 = vmatpush1.bf16.msra.mxu0 0
        %1539 = vmatprep.subr.bf16.mxu0 0
        %1540 = vmatpush1.bf16.msra.mxu0 0
        %1541 = vmatprep.subr.bf16.mxu0 0
        %1542 = vmatpush1.bf16.msra.mxu0 0
        %1543 = vmatprep.subr.bf16.mxu0 0
        %1544 = vmatpush1.bf16.msra.mxu0 0
        %1545 = vmatprep.subr.bf16.mxu0 0
        %1546 = vmatpush1.bf16.msra.mxu0 0
        %1547 = vmatprep.subr.bf16.mxu0 0
        %1548 = vmatpush1.bf16.msra.mxu0 0
        %1549 = vmatprep.subr.bf16.mxu0 0
        %1550 = vmatpush1.bf16.msra.mxu0 0
        %1551 = vmatprep.subr.bf16.mxu0 0
        %1552 = vmatpush1.bf16.msra.mxu0 0
        %1553 = vmatprep.mubr.bf16.mxu0 0
        %1554 = vmatmul.mubr.bf16.gmra.mrb[0].mxu0 %v1519
        %v1555 = vpop.f32.mrb[0].mxu0
        %v1556 = vadd.f32 %v1504, %v1555
        %v1557 = vpop.f32.mrb[0].mxu0
        %v1558 = vpop.f32.mrb[0].mxu0
        %v1559 = vpop.f32.mrb[0].mxu0
        %1560 = vdwg.mxu0
        %1561 = vst.msk [vmem:[%s297] sm:$0xff] %vm389, %v1556
        %s1562 = sand.u32 %s156, 1
        %s1563 = scalar_lea.sflag [#allocation6], %s1562
        %s1564 = sand.u32 %s156, 1
        %s1565 = smul.addr %s1564, 8
        %s1566 = scalar_lea.vmem [#allocation12], %s1565
        // Predicated region
        $region89: #{tpu_custom_call.1} parent=39 // pred_check
          %p1567 = pneg %p166
        $region90: #{tpu_custom_call.1} parent=39 // pred_check_branch
          %1569 = sbr.rel (%p1567) target = $region92
        $region91: #{tpu_custom_call.1} parent=39 // pred_region
          %s1571 = ssub.s32 128, 128
          %1572 = vsyncadd %s1563, %s1571
          %s1573 = sadd.s32 %s29, %s28
          %s1574 = smul.addr %s1573, 128
          %s1575 = scalar_lea.hbm %s5, %s1574
          %s1577 = sshll.u32 %s1566, 4
          %s1578 = int_to_ptr.vmem [resolvable:$true] %s1577
          %1580 = dma.vmem_to_hbm [thread:$0]  %s1578, 128, %s1575, %s1563
        $region92: #{tpu_custom_call.1} parent=39 // pred_fallthru
          _
      $region40: #{tpu_custom_call.1} parent=5 // pred_fallthru
        _
      %p1581 = scmp.le.s32.totalorder 2, %s19
      // Predicated region
      $region93: #{tpu_custom_call.1} parent=5 // pred_check
        %p1582 = pneg %p1581
      $region94: #{tpu_custom_call.1} parent=5 // pred_check_branch
        %1584 = sbr.rel (%p1582) target = $region96
      $region95: #{tpu_custom_call.1} parent=5 // pred_region
        %s1585 = ssub.s32 %s19, 2
        // Predicated region
        $region97: #{tpu_custom_call.1} parent=95 // pred_check
          %p1586 = pneg %p172
        $region98: #{tpu_custom_call.1} parent=95 // pred_check_branch
          %1588 = sbr.rel (%p1586) target = $region100
        $region99: #{tpu_custom_call.1} parent=95 // pred_region
          %s1589 = sand.u32 %s157, 1
          %s1590 = scalar_lea.sflag [#allocation6], %s1589
          %s1591 = sand.u32 %s157, 1
          %s1592 = smul.addr %s1591, 8
          %s1593 = scalar_lea.vmem [#allocation12], %s1592
          %1594 = dma.done %s1590, 128
        $region100: #{tpu_custom_call.1} parent=95 // pred_fallthru
          _
      $region96: #{tpu_custom_call.1} parent=5 // pred_fallthru
        _
    $region6: #{tpu_custom_call.1} parent=1 // loop_footer
      %s23 = sadd.s32 1, %s19
    $region7: #{tpu_custom_call.1} parent=1 // loop_footer_branch
      %18 = sbr.rel target = $region3
    $region8: #{tpu_custom_call.1} parent=1 // loop_exit
      _
    %1595 = vsyncpa [#allocation5], 1
    %s1596 = scalar_lea.sflag [#allocation5], 1
    %1597 = vsyncpa %s1596, 1
    %1598 = vsyncpa [#allocation8], 1
    %1599 = vsyncpa [#allocation11], 1
    %1600 = vsyncpa [#allocation6], 1
    %s1601 = scalar_lea.sflag [#allocation6], 1
    %1602 = vsyncpa %s1601, 1

</llo_original>
